<compile_context>
chip_gen: v7x
topology: tpu7x:2x2x1
jax: 0.10.0
libtpu: 0.0.40
codegen_flags: <defaults>
</compile_context>

<pallas_src>
import jax
import jax.numpy as jnp
from jax.experimental import pallas as pl
from jax.experimental.pallas import tpu as pltpu

EPS = 1e-5      # PyTorch BatchNorm1d default eps
Z_DIM = 4       # LSTM_embed z_dim
# Lane tile (batch columns per grid step). 128 for the toy run; for production
# batches raise to 512-4096 (xw tile = T*4Z*TB*2B bf16, double-buffered -> fits
# v7x's 64 MiB VMEM with headroom) and keep the grid for pipelining/megacore.
LANE_TILE = 128


# ----------------------------------------------------------------------------
# Fused Pallas kernel: LSTM recurrence (last hidden state) + MLP head
# ----------------------------------------------------------------------------
def fused_forward_kernel(xw_ref, whh_ref, catnum_ref,
                         w1_ref, b1_ref, w2_ref, b2_ref, w3_ref, b3_ref,
                         out_ref):
    """Eval-mode forward for one batch tile (batch along lanes).

    xw_ref     : (T, 4Z, TB) bf16  per-step gate pre-activations
                                   x_t @ W_ih^T + (b_ih + b_hh), g rows x2
    whh_ref    : (4Z, Z)    f32    PyTorch weight_hh_l0, g rows pre-scaled x2
    catnum_ref : (6, TB)    f32    [emb0 | emb1 | raw numeric] columns
    w1_ref     : (L1, 10)   f32    Linear-1 (numeric-BN folded)
    b1_ref     : (L1, 1)
    w2_ref     : (L2, L1)   f32    Linear-2 with eval BN1 folded in
    b2_ref     : (L2, 1)
    w3_ref     : (O, L2)    f32    Linear-3 with eval BN2 folded in
    b3_ref     : (O, 1)
    out_ref    : (O, TB)    f32
    """
    T = xw_ref.shape[0]
    G = whh_ref.shape[0]          # 4*Z
    Z = whh_ref.shape[1]
    TB = xw_ref.shape[2]

    # Loop-invariant lane-broadcasts of the W_hh columns, hoisted once
    # (JAX does not CSE broadcast_in_dim inside loops). 4 x (4Z, TB) ~ 8 vregs.
    whh = whh_ref[...]
    wcolB = [jnp.broadcast_to(whh[:, k:k + 1], (G, TB)) for k in range(Z)]

    h = jnp.zeros((Z, TB), jnp.float32)
    c = jnp.zeros((Z, TB), jnp.float32)

    # Statically unrolled recurrence (T small & fixed). Per step:
    #   4 full-width FMAs + 1 sigmoid push + 1 tanh push; per-step VMEM load of
    #   xw_ref[t] (vld slots are nearly free), no pre-hoisted slice lists.
    for t in range(T):
        pre = xw_ref[t].astype(jnp.float32)                       # (4Z, TB)
        hB = [jnp.broadcast_to(h[k:k + 1, :], (G, TB)) for k in range(Z)]
        rec01 = wcolB[0] * hB[0] + wcolB[1] * hB[1]
        rec23 = wcolB[2] * hB[2] + wcolB[3] * hB[3]
        pre = pre + (rec01 + rec23)

        s = jax.nn.sigmoid(pre)                                   # one EUP push
        gi = s[0 * Z:1 * Z]
        gf = s[1 * Z:2 * Z]
        gg = 2.0 * s[2 * Z:3 * Z] - 1.0       # tanh(pre_g) via pre-scaled sigmoid
        go = s[3 * Z:4 * Z]

        c = gf * c + gi * gg
        h = go * jnp.tanh(c)                                      # second push

    # MLP head, batch-on-lanes: activations are (features, TB) -> lane-dense MXU.
    feat = jnp.concatenate([catnum_ref[...], h], axis=0)          # (10, TB)
    h1 = jnp.dot(w1_ref[...], feat, preferred_element_type=jnp.float32) + b1_ref[...]
    h1 = jnp.maximum(h1, 0.0)
    h2 = jnp.dot(w2_ref[...], h1, preferred_element_type=jnp.float32) + b2_ref[...]
    h2 = jnp.maximum(h2, 0.0)
    out_ref[...] = jnp.dot(w3_ref[...], h2, preferred_element_type=jnp.float32) + b3_ref[...]


# ----------------------------------------------------------------------------
# Wrapper: embedding gathers (glue) + one fused pallas_call over batch tiles
# ----------------------------------------------------------------------------
@jax.jit
def lstm_iqvia_paper_forward(x, params):
    p = params
    # x: (B, 3 + T) float; cols 0,1 categorical ids, col 2 numeric, cols 3: seq ids
    x_cat = x[:, :2].astype(jnp.int32)
    x_num = x[:, 2:3]
    seq_ids = x[:, 3:].astype(jnp.int32)

    B = x.shape[0]
    T = seq_ids.shape[1]
    Bp = ((B + LANE_TILE - 1) // LANE_TILE) * LANE_TILE
    pad = Bp - B

    # Categorical embedding gathers (glue); dropout is identity in eval mode.
    emb0 = jnp.take(p["emb0"], x_cat[:, 0], axis=0)               # (B, 3)
    emb1 = jnp.take(p["emb1"], x_cat[:, 1], axis=0)               # (B, 2)
    # Features as columns: [emb0 | emb1 | raw numeric] (numeric BN folded into w1).
    catnum = jnp.concatenate([emb0, emb1, x_num], axis=1).T       # (6, B)

    # Gather the bf16 gate-pre-activation table and lay it out (T, 4Z, B).
    # TODO(synk): on v5e consider an in-kernel gather of the 942x16 table
    # (scalar-prefetched seq ids) to avoid the extra HBM round trip of xw.
    xw = jnp.take(p["xproj"], seq_ids, axis=0)                    # (B, T, 4Z) bf16
    xw = jnp.transpose(xw, (1, 2, 0))                             # (T, 4Z, B)

    if pad:
        catnum = jnp.pad(catnum, ((0, 0), (0, pad)))
        xw = jnp.pad(xw, ((0, 0), (0, 0), (0, pad)))

    G = 4 * Z_DIM
    l1 = p["w1"].shape[0]
    l2 = p["w2"].shape[0]
    out_dim = p["w3"].shape[0]
    n_tiles = Bp // LANE_TILE

    full = lambda shape: pl.BlockSpec(shape, lambda b: (0,) * len(shape))

    out = pl.pallas_call(
        fused_forward_kernel,
        out_shape=jax.ShapeDtypeStruct((out_dim, Bp), jnp.float32),
        grid=(n_tiles,),
        in_specs=[
            pl.BlockSpec((T, G, LANE_TILE), lambda b: (0, 0, b)),   # xw stream
            full((G, Z_DIM)),                                       # whh
            pl.BlockSpec((6, LANE_TILE), lambda b: (0, b)),         # catnum
            full((l1, 6 + Z_DIM)), full((l1, 1)),                   # w1, b1
            full((l2, l1)), full((l2, 1)),                          # w2, b2
            full((out_dim, l2)), full((out_dim, 1)),                # w3, b3
        ],
        out_specs=pl.BlockSpec((out_dim, LANE_TILE), lambda b: (0, b)),
        compiler_params=pltpu.CompilerParams(
            dimension_semantics=("parallel",)),
    )(xw, p["whh"], catnum,
      p["w1"], p["b1"], p["w2"], p["b2"], p["w3"], p["b3"])

    return out[:, :B].T                                            # (B, O)


# ----------------------------------------------------------------------------
# Deterministic parameter construction (raw PyTorch-style params + eval folds)
# ----------------------------------------------------------------------------
def make_params():
    key = jax.random.PRNGKey(42)
    ks = iter(jax.random.split(key, 32))
    rnd = lambda shape, s=0.1: (s * jax.random.normal(next(ks), shape)).astype(jnp.float32)

    vocab_diag = 941 + 1
    hidden_dim, z_dim = 2, Z_DIM
    emb_sizes = [(10, 3), (8, 2)]        # embedding_size arg
    layers = [16, 8]                     # layers arg
    output_size = 3
    d_cat = sum(nf for _, nf in emb_sizes)      # 5
    d_in = d_cat + 1 + z_dim                    # 10

    p = {}
    p["emb0"] = rnd((emb_sizes[0][0], emb_sizes[0][1]), 1.0)
    p["emb1"] = rnd((emb_sizes[1][0], emb_sizes[1][1]), 1.0)

    # BatchNorm1d(num_numerical_cols=1) running stats / affine (eval mode).
    bnn_gamma = jnp.ones((1,), jnp.float32)
    bnn_beta = jnp.zeros((1,), jnp.float32)
    bnn_mean = rnd((1,))
    bnn_var = jnp.abs(rnd((1,))) + 1.0

    # LSTM_embed: Embedding(942, 2) + LSTM(input=2, hidden=4), PyTorch layout,
    # gate order [i, f, g, o].
    lstm_emb = rnd((vocab_diag, hidden_dim), 1.0)
    w_ih = rnd((4 * z_dim, hidden_dim), 0.3)     # weight_ih_l0 (4Z, H_in)
    w_hh = rnd((4 * z_dim, z_dim), 0.3)          # weight_hh_l0 (4Z, Z)
    b_ih = rnd((4 * z_dim,), 0.1)
    b_hh = rnd((4 * z_dim,), 0.1)

    # ---- derived inference-time parameters --------------------------------
    # Per-token gate pre-activation table: x @ W_ih^T + (b_ih + b_hh); hoists the
    # input projection out of the serialized recurrence. The g-gate columns are
    # pre-scaled by 2 (both here and in W_hh) so the kernel recovers
    # tanh(pre_g) = 2*sigmoid(2*pre_g) - 1 from one fused sigmoid push.
    xproj = jnp.dot(lstm_emb, w_ih.T) + (b_ih + b_hh)[None, :]     # (vocab, 4Z)
    gsc = jnp.ones((4 * z_dim,), jnp.float32).at[2 * z_dim:3 * z_dim].set(2.0)
    p["xproj"] = (xproj * gsc[None, :]).astype(jnp.bfloat16)       # bf16 HBM stream
    p["whh"] = (w_hh * gsc[:, None]).astype(jnp.float32)           # (4Z, Z)

    # MLP head raw params, PyTorch Linear layout (out, in).
    l1, l2 = layers
    w1 = rnd((l1, d_in), 0.3); b1 = rnd((l1,))
    g1 = jnp.ones((l1,), jnp.float32); be1 = jnp.zeros((l1,), jnp.float32)
    m1 = rnd((l1,)); v1 = jnp.abs(rnd((l1,))) + 1.0
    w2 = rnd((l2, l1), 0.3); b2 = rnd((l2,))
    g2 = jnp.ones((l2,), jnp.float32); be2 = jnp.zeros((l2,), jnp.float32)
    m2 = rnd((l2,)); v2 = jnp.abs(rnd((l2,))) + 1.0
    w3 = rnd((output_size, l2), 0.3); b3 = rnd((output_size,))

    # Fold the numeric-column eval BatchNorm (applied before Linear-1) into
    # Linear-1's numeric input column (feature index d_cat).
    s_n = bnn_gamma * jax.lax.rsqrt(bnn_var + EPS)
    t_n = bnn_beta - bnn_mean * s_n
    p["w1"] = w1.at[:, d_cat].multiply(s_n[0])
    p["b1"] = (b1 + t_n[0] * w1[:, d_cat]).reshape(l1, 1)

    # Spec head ordering is Linear -> ReLU -> BatchNorm -> Dropout, so each eval
    # BN folds into the NEXT Linear (no commuting past the ReLU is needed):
    #   W2 @ (s1*r + t1) + b2 = (W2 * s1[None,:]) @ r + (b2 + W2 @ t1).
    s1 = g1 * jax.lax.rsqrt(v1 + EPS); t1 = be1 - m1 * s1
    p["w2"] = w2 * s1[None, :]
    p["b2"] = (b2 + jnp.dot(w2, t1)).reshape(l2, 1)

    s2 = g2 * jax.lax.rsqrt(v2 + EPS); t2 = be2 - m2 * s2
    p["w3"] = w3 * s2[None, :]
    p["b3"] = (b3 + jnp.dot(w3, t2)).reshape(output_size, 1)

    return p


if __name__ == "__main__":
    params = make_params()

    # Deterministic input: (B, 3 + T) with B=4, T=8
    B, T = 4, 8
    k0, k1, k2, k3 = jax.random.split(jax.random.PRNGKey(0), 4)
    cat0 = jax.random.randint(k0, (B, 1), 0, 10).astype(jnp.float32)
    cat1 = jax.random.randint(k1, (B, 1), 0, 8).astype(jnp.float32)
    num = jax.random.normal(k2, (B, 1), dtype=jnp.float32)
    seqs = jax.random.randint(k3, (B, T), 0, 942).astype(jnp.float32)
    x = jnp.concatenate([cat0, cat1, num, seqs], axis=1)  # (4, 11)

    # TODO(synk): training-mode dropout / batch-statistics BatchNorm not implemented
    # (eval-mode inference semantics are reproduced; eval BNs folded into the Linears).
    out = lstm_iqvia_paper_forward(x, params)
    out = jax.block_until_ready(out)
    assert out.shape == (B, 3), out.shape
    assert bool(jnp.all(jnp.isfinite(out)))
    print("KERNEL_OK")
</pallas_src>

<mosaic_0001>
module attributes {stable_mosaic.version = 11 : i64} {
  func.func @fused_forward_kernel(%arg0: i32, %arg1: memref<8x16x128xbf16, #tpu.memory_space<vmem>>, %arg2: memref<16x4xf32, #tpu.memory_space<vmem>>, %arg3: memref<6x128xf32, #tpu.memory_space<vmem>>, %arg4: memref<16x10xf32, #tpu.memory_space<vmem>>, %arg5: memref<16x1xf32, #tpu.memory_space<vmem>>, %arg6: memref<8x16xf32, #tpu.memory_space<vmem>>, %arg7: memref<8x1xf32, #tpu.memory_space<vmem>>, %arg8: memref<3x8xf32, #tpu.memory_space<vmem>>, %arg9: memref<3x1xf32, #tpu.memory_space<vmem>>, %arg10: memref<3x128xf32, #tpu.memory_space<vmem>>) attributes {dimension_semantics = [#tpu.dimension_semantics<parallel>], iteration_bounds = array<i64: 1>, scalar_prefetch = 0 : i64, scratch_operands = 0 : i64, tpu.core_type = #tpu.core_type<tc>, window_params = [{transform_indices = @transform_0, window_bounds = array<i64: 8, 16, 128>}, {pipeline_mode = #tpu.pipeline_mode<synchronous>, transform_indices = @transform_1, window_bounds = array<i64: 16, 4>}, {transform_indices = @transform_2, window_bounds = array<i64: 6, 128>}, {pipeline_mode = #tpu.pipeline_mode<synchronous>, transform_indices = @transform_3, window_bounds = array<i64: 16, 10>}, {pipeline_mode = #tpu.pipeline_mode<synchronous>, transform_indices = @transform_4, window_bounds = array<i64: 16, 1>}, {pipeline_mode = #tpu.pipeline_mode<synchronous>, transform_indices = @transform_5, window_bounds = array<i64: 8, 16>}, {pipeline_mode = #tpu.pipeline_mode<synchronous>, transform_indices = @transform_6, window_bounds = array<i64: 8, 1>}, {pipeline_mode = #tpu.pipeline_mode<synchronous>, transform_indices = @transform_7, window_bounds = array<i64: 3, 8>}, {pipeline_mode = #tpu.pipeline_mode<synchronous>, transform_indices = @transform_8, window_bounds = array<i64: 3, 1>}, {transform_indices = @transform_9, window_bounds = array<i64: 3, 128>}]} {
    %c0 = arith.constant 0 : index
    %c0_0 = arith.constant 0 : index
    %0 = vector.load %arg2[%c0, %c0_0] : memref<16x4xf32, #tpu.memory_space<vmem>>, vector<16x4xf32>
    %1 = vector.extract_strided_slice %0 {offsets = [0, 0], sizes = [16, 1], strides = [1, 1]} : vector<16x4xf32> to vector<16x1xf32>
    %2 = vector.shape_cast %1 : vector<16x1xf32> to vector<16x1xf32>
    %3 = vector.broadcast %2 : vector<16x1xf32> to vector<16x128xf32>
    %4 = vector.extract_strided_slice %0 {offsets = [0, 1], sizes = [16, 1], strides = [1, 1]} : vector<16x4xf32> to vector<16x1xf32>
    %5 = vector.shape_cast %4 : vector<16x1xf32> to vector<16x1xf32>
    %6 = vector.broadcast %5 : vector<16x1xf32> to vector<16x128xf32>
    %7 = vector.extract_strided_slice %0 {offsets = [0, 2], sizes = [16, 1], strides = [1, 1]} : vector<16x4xf32> to vector<16x1xf32>
    %8 = vector.shape_cast %7 : vector<16x1xf32> to vector<16x1xf32>
    %9 = vector.broadcast %8 : vector<16x1xf32> to vector<16x128xf32>
    %10 = vector.extract_strided_slice %0 {offsets = [0, 3], sizes = [16, 1], strides = [1, 1]} : vector<16x4xf32> to vector<16x1xf32>
    %11 = vector.shape_cast %10 : vector<16x1xf32> to vector<16x1xf32>
    %12 = vector.broadcast %11 : vector<16x1xf32> to vector<16x128xf32>
    %cst = arith.constant 0.000000e+00 : f32
    %13 = vector.broadcast %cst : f32 to vector<4x128xf32>
    %cst_1 = arith.constant 0.000000e+00 : f32
    %14 = vector.broadcast %cst_1 : f32 to vector<4x128xf32>
    %c0_2 = arith.constant 0 : index
    %c0_3 = arith.constant 0 : index
    %c0_4 = arith.constant 0 : index
    %15 = vector.load %arg1[%c0_2, %c0_3, %c0_4] : memref<8x16x128xbf16, #tpu.memory_space<vmem>>, vector<1x16x128xbf16>
    %16 = vector.shape_cast %15 : vector<1x16x128xbf16> to vector<16x128xbf16>
    %17 = arith.extf %16 : vector<16x128xbf16> to vector<16x128xf32>
    %18 = vector.extract_strided_slice %13 {offsets = [0, 0], sizes = [1, 128], strides = [1, 1]} : vector<4x128xf32> to vector<1x128xf32>
    %19 = vector.shape_cast %18 : vector<1x128xf32> to vector<1x128xf32>
    %20 = vector.broadcast %19 : vector<1x128xf32> to vector<16x128xf32>
    %21 = vector.extract_strided_slice %13 {offsets = [1, 0], sizes = [1, 128], strides = [1, 1]} : vector<4x128xf32> to vector<1x128xf32>
    %22 = vector.shape_cast %21 : vector<1x128xf32> to vector<1x128xf32>
    %23 = vector.broadcast %22 : vector<1x128xf32> to vector<16x128xf32>
    %24 = vector.extract_strided_slice %13 {offsets = [2, 0], sizes = [1, 128], strides = [1, 1]} : vector<4x128xf32> to vector<1x128xf32>
    %25 = vector.shape_cast %24 : vector<1x128xf32> to vector<1x128xf32>
    %26 = vector.broadcast %25 : vector<1x128xf32> to vector<16x128xf32>
    %27 = vector.extract_strided_slice %13 {offsets = [3, 0], sizes = [1, 128], strides = [1, 1]} : vector<4x128xf32> to vector<1x128xf32>
    %28 = vector.shape_cast %27 : vector<1x128xf32> to vector<1x128xf32>
    %29 = vector.broadcast %28 : vector<1x128xf32> to vector<16x128xf32>
    %30 = arith.mulf %3, %20 : vector<16x128xf32>
    %31 = arith.mulf %6, %23 : vector<16x128xf32>
    %32 = arith.addf %30, %31 : vector<16x128xf32>
    %33 = arith.mulf %9, %26 : vector<16x128xf32>
    %34 = arith.mulf %12, %29 : vector<16x128xf32>
    %35 = arith.addf %33, %34 : vector<16x128xf32>
    %36 = arith.addf %32, %35 : vector<16x128xf32>
    %37 = arith.addf %17, %36 : vector<16x128xf32>
    %38 = arith.negf %37 : vector<16x128xf32>
    %39 = math.exp %38 : vector<16x128xf32>
    %cst_5 = arith.constant 1.000000e+00 : f32
    %40 = vector.broadcast %cst_5 : f32 to vector<16x128xf32>
    %41 = arith.addf %40, %39 : vector<16x128xf32>
    %42 = arith.divf %40, %41 : vector<16x128xf32>
    %43 = vector.extract_strided_slice %42 {offsets = [0, 0], sizes = [4, 128], strides = [1, 1]} : vector<16x128xf32> to vector<4x128xf32>
    %44 = vector.extract_strided_slice %42 {offsets = [4, 0], sizes = [4, 128], strides = [1, 1]} : vector<16x128xf32> to vector<4x128xf32>
    %45 = vector.extract_strided_slice %42 {offsets = [8, 0], sizes = [4, 128], strides = [1, 1]} : vector<16x128xf32> to vector<4x128xf32>
    %cst_6 = arith.constant 2.000000e+00 : f32
    %46 = vector.broadcast %cst_6 : f32 to vector<4x128xf32>
    %47 = arith.mulf %46, %45 : vector<4x128xf32>
    %cst_7 = arith.constant 1.000000e+00 : f32
    %48 = vector.broadcast %cst_7 : f32 to vector<4x128xf32>
    %49 = arith.subf %47, %48 : vector<4x128xf32>
    %50 = vector.extract_strided_slice %42 {offsets = [12, 0], sizes = [4, 128], strides = [1, 1]} : vector<16x128xf32> to vector<4x128xf32>
    %51 = arith.mulf %44, %14 : vector<4x128xf32>
    %52 = arith.mulf %43, %49 : vector<4x128xf32>
    %53 = arith.addf %51, %52 : vector<4x128xf32>
    %54 = math.tanh %53 : vector<4x128xf32>
    %55 = arith.mulf %50, %54 : vector<4x128xf32>
    %c1 = arith.constant 1 : index
    %c0_8 = arith.constant 0 : index
    %c0_9 = arith.constant 0 : index
    %56 = vector.load %arg1[%c1, %c0_8, %c0_9] : memref<8x16x128xbf16, #tpu.memory_space<vmem>>, vector<1x16x128xbf16>
    %57 = vector.shape_cast %56 : vector<1x16x128xbf16> to vector<16x128xbf16>
    %58 = arith.extf %57 : vector<16x128xbf16> to vector<16x128xf32>
    %59 = vector.extract_strided_slice %55 {offsets = [0, 0], sizes = [1, 128], strides = [1, 1]} : vector<4x128xf32> to vector<1x128xf32>
    %60 = vector.shape_cast %59 : vector<1x128xf32> to vector<1x128xf32>
    %61 = vector.broadcast %60 : vector<1x128xf32> to vector<16x128xf32>
    %62 = vector.extract_strided_slice %55 {offsets = [1, 0], sizes = [1, 128], strides = [1, 1]} : vector<4x128xf32> to vector<1x128xf32>
    %63 = vector.shape_cast %62 : vector<1x128xf32> to vector<1x128xf32>
    %64 = vector.broadcast %63 : vector<1x128xf32> to vector<16x128xf32>
    %65 = vector.extract_strided_slice %55 {offsets = [2, 0], sizes = [1, 128], strides = [1, 1]} : vector<4x128xf32> to vector<1x128xf32>
    %66 = vector.shape_cast %65 : vector<1x128xf32> to vector<1x128xf32>
    %67 = vector.broadcast %66 : vector<1x128xf32> to vector<16x128xf32>
    %68 = vector.extract_strided_slice %55 {offsets = [3, 0], sizes = [1, 128], strides = [1, 1]} : vector<4x128xf32> to vector<1x128xf32>
    %69 = vector.shape_cast %68 : vector<1x128xf32> to vector<1x128xf32>
    %70 = vector.broadcast %69 : vector<1x128xf32> to vector<16x128xf32>
    %71 = arith.mulf %3, %61 : vector<16x128xf32>
    %72 = arith.mulf %6, %64 : vector<16x128xf32>
    %73 = arith.addf %71, %72 : vector<16x128xf32>
    %74 = arith.mulf %9, %67 : vector<16x128xf32>
    %75 = arith.mulf %12, %70 : vector<16x128xf32>
    %76 = arith.addf %74, %75 : vector<16x128xf32>
    %77 = arith.addf %73, %76 : vector<16x128xf32>
    %78 = arith.addf %58, %77 : vector<16x128xf32>
    %79 = arith.negf %78 : vector<16x128xf32>
    %80 = math.exp %79 : vector<16x128xf32>
    %cst_10 = arith.constant 1.000000e+00 : f32
    %81 = vector.broadcast %cst_10 : f32 to vector<16x128xf32>
    %82 = arith.addf %81, %80 : vector<16x128xf32>
    %83 = arith.divf %81, %82 : vector<16x128xf32>
    %84 = vector.extract_strided_slice %83 {offsets = [0, 0], sizes = [4, 128], strides = [1, 1]} : vector<16x128xf32> to vector<4x128xf32>
    %85 = vector.extract_strided_slice %83 {offsets = [4, 0], sizes = [4, 128], strides = [1, 1]} : vector<16x128xf32> to vector<4x128xf32>
    %86 = vector.extract_strided_slice %83 {offsets = [8, 0], sizes = [4, 128], strides = [1, 1]} : vector<16x128xf32> to vector<4x128xf32>
    %cst_11 = arith.constant 2.000000e+00 : f32
    %87 = vector.broadcast %cst_11 : f32 to vector<4x128xf32>
    %88 = arith.mulf %87, %86 : vector<4x128xf32>
    %cst_12 = arith.constant 1.000000e+00 : f32
    %89 = vector.broadcast %cst_12 : f32 to vector<4x128xf32>
    %90 = arith.subf %88, %89 : vector<4x128xf32>
    %91 = vector.extract_strided_slice %83 {offsets = [12, 0], sizes = [4, 128], strides = [1, 1]} : vector<16x128xf32> to vector<4x128xf32>
    %92 = arith.mulf %85, %53 : vector<4x128xf32>
    %93 = arith.mulf %84, %90 : vector<4x128xf32>
    %94 = arith.addf %92, %93 : vector<4x128xf32>
    %95 = math.tanh %94 : vector<4x128xf32>
    %96 = arith.mulf %91, %95 : vector<4x128xf32>
    %c2 = arith.constant 2 : index
    %c0_13 = arith.constant 0 : index
    %c0_14 = arith.constant 0 : index
    %97 = vector.load %arg1[%c2, %c0_13, %c0_14] : memref<8x16x128xbf16, #tpu.memory_space<vmem>>, vector<1x16x128xbf16>
    %98 = vector.shape_cast %97 : vector<1x16x128xbf16> to vector<16x128xbf16>
    %99 = arith.extf %98 : vector<16x128xbf16> to vector<16x128xf32>
    %100 = vector.extract_strided_slice %96 {offsets = [0, 0], sizes = [1, 128], strides = [1, 1]} : vector<4x128xf32> to vector<1x128xf32>
    %101 = vector.shape_cast %100 : vector<1x128xf32> to vector<1x128xf32>
    %102 = vector.broadcast %101 : vector<1x128xf32> to vector<16x128xf32>
    %103 = vector.extract_strided_slice %96 {offsets = [1, 0], sizes = [1, 128], strides = [1, 1]} : vector<4x128xf32> to vector<1x128xf32>
    %104 = vector.shape_cast %103 : vector<1x128xf32> to vector<1x128xf32>
    %105 = vector.broadcast %104 : vector<1x128xf32> to vector<16x128xf32>
    %106 = vector.extract_strided_slice %96 {offsets = [2, 0], sizes = [1, 128], strides = [1, 1]} : vector<4x128xf32> to vector<1x128xf32>
    %107 = vector.shape_cast %106 : vector<1x128xf32> to vector<1x128xf32>
    %108 = vector.broadcast %107 : vector<1x128xf32> to vector<16x128xf32>
    %109 = vector.extract_strided_slice %96 {offsets = [3, 0], sizes = [1, 128], strides = [1, 1]} : vector<4x128xf32> to vector<1x128xf32>
    %110 = vector.shape_cast %109 : vector<1x128xf32> to vector<1x128xf32>
    %111 = vector.broadcast %110 : vector<1x128xf32> to vector<16x128xf32>
    %112 = arith.mulf %3, %102 : vector<16x128xf32>
    %113 = arith.mulf %6, %105 : vector<16x128xf32>
    %114 = arith.addf %112, %113 : vector<16x128xf32>
    %115 = arith.mulf %9, %108 : vector<16x128xf32>
    %116 = arith.mulf %12, %111 : vector<16x128xf32>
    %117 = arith.addf %115, %116 : vector<16x128xf32>
    %118 = arith.addf %114, %117 : vector<16x128xf32>
    %119 = arith.addf %99, %118 : vector<16x128xf32>
    %120 = arith.negf %119 : vector<16x128xf32>
    %121 = math.exp %120 : vector<16x128xf32>
    %cst_15 = arith.constant 1.000000e+00 : f32
    %122 = vector.broadcast %cst_15 : f32 to vector<16x128xf32>
    %123 = arith.addf %122, %121 : vector<16x128xf32>
    %124 = arith.divf %122, %123 : vector<16x128xf32>
    %125 = vector.extract_strided_slice %124 {offsets = [0, 0], sizes = [4, 128], strides = [1, 1]} : vector<16x128xf32> to vector<4x128xf32>
    %126 = vector.extract_strided_slice %124 {offsets = [4, 0], sizes = [4, 128], strides = [1, 1]} : vector<16x128xf32> to vector<4x128xf32>
    %127 = vector.extract_strided_slice %124 {offsets = [8, 0], sizes = [4, 128], strides = [1, 1]} : vector<16x128xf32> to vector<4x128xf32>
    %cst_16 = arith.constant 2.000000e+00 : f32
    %128 = vector.broadcast %cst_16 : f32 to vector<4x128xf32>
    %129 = arith.mulf %128, %127 : vector<4x128xf32>
    %cst_17 = arith.constant 1.000000e+00 : f32
    %130 = vector.broadcast %cst_17 : f32 to vector<4x128xf32>
    %131 = arith.subf %129, %130 : vector<4x128xf32>
    %132 = vector.extract_strided_slice %124 {offsets = [12, 0], sizes = [4, 128], strides = [1, 1]} : vector<16x128xf32> to vector<4x128xf32>
    %133 = arith.mulf %126, %94 : vector<4x128xf32>
    %134 = arith.mulf %125, %131 : vector<4x128xf32>
    %135 = arith.addf %133, %134 : vector<4x128xf32>
    %136 = math.tanh %135 : vector<4x128xf32>
    %137 = arith.mulf %132, %136 : vector<4x128xf32>
    %c3 = arith.constant 3 : index
    %c0_18 = arith.constant 0 : index
    %c0_19 = arith.constant 0 : index
    %138 = vector.load %arg1[%c3, %c0_18, %c0_19] : memref<8x16x128xbf16, #tpu.memory_space<vmem>>, vector<1x16x128xbf16>
    %139 = vector.shape_cast %138 : vector<1x16x128xbf16> to vector<16x128xbf16>
    %140 = arith.extf %139 : vector<16x128xbf16> to vector<16x128xf32>
    %141 = vector.extract_strided_slice %137 {offsets = [0, 0], sizes = [1, 128], strides = [1, 1]} : vector<4x128xf32> to vector<1x128xf32>
    %142 = vector.shape_cast %141 : vector<1x128xf32> to vector<1x128xf32>
    %143 = vector.broadcast %142 : vector<1x128xf32> to vector<16x128xf32>
    %144 = vector.extract_strided_slice %137 {offsets = [1, 0], sizes = [1, 128], strides = [1, 1]} : vector<4x128xf32> to vector<1x128xf32>
    %145 = vector.shape_cast %144 : vector<1x128xf32> to vector<1x128xf32>
    %146 = vector.broadcast %145 : vector<1x128xf32> to vector<16x128xf32>
    %147 = vector.extract_strided_slice %137 {offsets = [2, 0], sizes = [1, 128], strides = [1, 1]} : vector<4x128xf32> to vector<1x128xf32>
    %148 = vector.shape_cast %147 : vector<1x128xf32> to vector<1x128xf32>
    %149 = vector.broadcast %148 : vector<1x128xf32> to vector<16x128xf32>
    %150 = vector.extract_strided_slice %137 {offsets = [3, 0], sizes = [1, 128], strides = [1, 1]} : vector<4x128xf32> to vector<1x128xf32>
    %151 = vector.shape_cast %150 : vector<1x128xf32> to vector<1x128xf32>
    %152 = vector.broadcast %151 : vector<1x128xf32> to vector<16x128xf32>
    %153 = arith.mulf %3, %143 : vector<16x128xf32>
    %154 = arith.mulf %6, %146 : vector<16x128xf32>
    %155 = arith.addf %153, %154 : vector<16x128xf32>
    %156 = arith.mulf %9, %149 : vector<16x128xf32>
    %157 = arith.mulf %12, %152 : vector<16x128xf32>
    %158 = arith.addf %156, %157 : vector<16x128xf32>
    %159 = arith.addf %155, %158 : vector<16x128xf32>
    %160 = arith.addf %140, %159 : vector<16x128xf32>
    %161 = arith.negf %160 : vector<16x128xf32>
    %162 = math.exp %161 : vector<16x128xf32>
    %cst_20 = arith.constant 1.000000e+00 : f32
    %163 = vector.broadcast %cst_20 : f32 to vector<16x128xf32>
    %164 = arith.addf %163, %162 : vector<16x128xf32>
    %165 = arith.divf %163, %164 : vector<16x128xf32>
    %166 = vector.extract_strided_slice %165 {offsets = [0, 0], sizes = [4, 128], strides = [1, 1]} : vector<16x128xf32> to vector<4x128xf32>
    %167 = vector.extract_strided_slice %165 {offsets = [4, 0], sizes = [4, 128], strides = [1, 1]} : vector<16x128xf32> to vector<4x128xf32>
    %168 = vector.extract_strided_slice %165 {offsets = [8, 0], sizes = [4, 128], strides = [1, 1]} : vector<16x128xf32> to vector<4x128xf32>
    %cst_21 = arith.constant 2.000000e+00 : f32
    %169 = vector.broadcast %cst_21 : f32 to vector<4x128xf32>
    %170 = arith.mulf %169, %168 : vector<4x128xf32>
    %cst_22 = arith.constant 1.000000e+00 : f32
    %171 = vector.broadcast %cst_22 : f32 to vector<4x128xf32>
    %172 = arith.subf %170, %171 : vector<4x128xf32>
    %173 = vector.extract_strided_slice %165 {offsets = [12, 0], sizes = [4, 128], strides = [1, 1]} : vector<16x128xf32> to vector<4x128xf32>
    %174 = arith.mulf %167, %135 : vector<4x128xf32>
    %175 = arith.mulf %166, %172 : vector<4x128xf32>
    %176 = arith.addf %174, %175 : vector<4x128xf32>
    %177 = math.tanh %176 : vector<4x128xf32>
    %178 = arith.mulf %173, %177 : vector<4x128xf32>
    %c4 = arith.constant 4 : index
    %c0_23 = arith.constant 0 : index
    %c0_24 = arith.constant 0 : index
    %179 = vector.load %arg1[%c4, %c0_23, %c0_24] : memref<8x16x128xbf16, #tpu.memory_space<vmem>>, vector<1x16x128xbf16>
    %180 = vector.shape_cast %179 : vector<1x16x128xbf16> to vector<16x128xbf16>
    %181 = arith.extf %180 : vector<16x128xbf16> to vector<16x128xf32>
    %182 = vector.extract_strided_slice %178 {offsets = [0, 0], sizes = [1, 128], strides = [1, 1]} : vector<4x128xf32> to vector<1x128xf32>
    %183 = vector.shape_cast %182 : vector<1x128xf32> to vector<1x128xf32>
    %184 = vector.broadcast %183 : vector<1x128xf32> to vector<16x128xf32>
    %185 = vector.extract_strided_slice %178 {offsets = [1, 0], sizes = [1, 128], strides = [1, 1]} : vector<4x128xf32> to vector<1x128xf32>
    %186 = vector.shape_cast %185 : vector<1x128xf32> to vector<1x128xf32>
    %187 = vector.broadcast %186 : vector<1x128xf32> to vector<16x128xf32>
    %188 = vector.extract_strided_slice %178 {offsets = [2, 0], sizes = [1, 128], strides = [1, 1]} : vector<4x128xf32> to vector<1x128xf32>
    %189 = vector.shape_cast %188 : vector<1x128xf32> to vector<1x128xf32>
    %190 = vector.broadcast %189 : vector<1x128xf32> to vector<16x128xf32>
    %191 = vector.extract_strided_slice %178 {offsets = [3, 0], sizes = [1, 128], strides = [1, 1]} : vector<4x128xf32> to vector<1x128xf32>
    %192 = vector.shape_cast %191 : vector<1x128xf32> to vector<1x128xf32>
    %193 = vector.broadcast %192 : vector<1x128xf32> to vector<16x128xf32>
    %194 = arith.mulf %3, %184 : vector<16x128xf32>
    %195 = arith.mulf %6, %187 : vector<16x128xf32>
    %196 = arith.addf %194, %195 : vector<16x128xf32>
    %197 = arith.mulf %9, %190 : vector<16x128xf32>
    %198 = arith.mulf %12, %193 : vector<16x128xf32>
    %199 = arith.addf %197, %198 : vector<16x128xf32>
    %200 = arith.addf %196, %199 : vector<16x128xf32>
    %201 = arith.addf %181, %200 : vector<16x128xf32>
    %202 = arith.negf %201 : vector<16x128xf32>
    %203 = math.exp %202 : vector<16x128xf32>
    %cst_25 = arith.constant 1.000000e+00 : f32
    %204 = vector.broadcast %cst_25 : f32 to vector<16x128xf32>
    %205 = arith.addf %204, %203 : vector<16x128xf32>
    %206 = arith.divf %204, %205 : vector<16x128xf32>
    %207 = vector.extract_strided_slice %206 {offsets = [0, 0], sizes = [4, 128], strides = [1, 1]} : vector<16x128xf32> to vector<4x128xf32>
    %208 = vector.extract_strided_slice %206 {offsets = [4, 0], sizes = [4, 128], strides = [1, 1]} : vector<16x128xf32> to vector<4x128xf32>
    %209 = vector.extract_strided_slice %206 {offsets = [8, 0], sizes = [4, 128], strides = [1, 1]} : vector<16x128xf32> to vector<4x128xf32>
    %cst_26 = arith.constant 2.000000e+00 : f32
    %210 = vector.broadcast %cst_26 : f32 to vector<4x128xf32>
    %211 = arith.mulf %210, %209 : vector<4x128xf32>
    %cst_27 = arith.constant 1.000000e+00 : f32
    %212 = vector.broadcast %cst_27 : f32 to vector<4x128xf32>
    %213 = arith.subf %211, %212 : vector<4x128xf32>
    %214 = vector.extract_strided_slice %206 {offsets = [12, 0], sizes = [4, 128], strides = [1, 1]} : vector<16x128xf32> to vector<4x128xf32>
    %215 = arith.mulf %208, %176 : vector<4x128xf32>
    %216 = arith.mulf %207, %213 : vector<4x128xf32>
    %217 = arith.addf %215, %216 : vector<4x128xf32>
    %218 = math.tanh %217 : vector<4x128xf32>
    %219 = arith.mulf %214, %218 : vector<4x128xf32>
    %c5 = arith.constant 5 : index
    %c0_28 = arith.constant 0 : index
    %c0_29 = arith.constant 0 : index
    %220 = vector.load %arg1[%c5, %c0_28, %c0_29] : memref<8x16x128xbf16, #tpu.memory_space<vmem>>, vector<1x16x128xbf16>
    %221 = vector.shape_cast %220 : vector<1x16x128xbf16> to vector<16x128xbf16>
    %222 = arith.extf %221 : vector<16x128xbf16> to vector<16x128xf32>
    %223 = vector.extract_strided_slice %219 {offsets = [0, 0], sizes = [1, 128], strides = [1, 1]} : vector<4x128xf32> to vector<1x128xf32>
    %224 = vector.shape_cast %223 : vector<1x128xf32> to vector<1x128xf32>
    %225 = vector.broadcast %224 : vector<1x128xf32> to vector<16x128xf32>
    %226 = vector.extract_strided_slice %219 {offsets = [1, 0], sizes = [1, 128], strides = [1, 1]} : vector<4x128xf32> to vector<1x128xf32>
    %227 = vector.shape_cast %226 : vector<1x128xf32> to vector<1x128xf32>
    %228 = vector.broadcast %227 : vector<1x128xf32> to vector<16x128xf32>
    %229 = vector.extract_strided_slice %219 {offsets = [2, 0], sizes = [1, 128], strides = [1, 1]} : vector<4x128xf32> to vector<1x128xf32>
    %230 = vector.shape_cast %229 : vector<1x128xf32> to vector<1x128xf32>
    %231 = vector.broadcast %230 : vector<1x128xf32> to vector<16x128xf32>
    %232 = vector.extract_strided_slice %219 {offsets = [3, 0], sizes = [1, 128], strides = [1, 1]} : vector<4x128xf32> to vector<1x128xf32>
    %233 = vector.shape_cast %232 : vector<1x128xf32> to vector<1x128xf32>
    %234 = vector.broadcast %233 : vector<1x128xf32> to vector<16x128xf32>
    %235 = arith.mulf %3, %225 : vector<16x128xf32>
    %236 = arith.mulf %6, %228 : vector<16x128xf32>
    %237 = arith.addf %235, %236 : vector<16x128xf32>
    %238 = arith.mulf %9, %231 : vector<16x128xf32>
    %239 = arith.mulf %12, %234 : vector<16x128xf32>
    %240 = arith.addf %238, %239 : vector<16x128xf32>
    %241 = arith.addf %237, %240 : vector<16x128xf32>
    %242 = arith.addf %222, %241 : vector<16x128xf32>
    %243 = arith.negf %242 : vector<16x128xf32>
    %244 = math.exp %243 : vector<16x128xf32>
    %cst_30 = arith.constant 1.000000e+00 : f32
    %245 = vector.broadcast %cst_30 : f32 to vector<16x128xf32>
    %246 = arith.addf %245, %244 : vector<16x128xf32>
    %247 = arith.divf %245, %246 : vector<16x128xf32>
    %248 = vector.extract_strided_slice %247 {offsets = [0, 0], sizes = [4, 128], strides = [1, 1]} : vector<16x128xf32> to vector<4x128xf32>
    %249 = vector.extract_strided_slice %247 {offsets = [4, 0], sizes = [4, 128], strides = [1, 1]} : vector<16x128xf32> to vector<4x128xf32>
    %250 = vector.extract_strided_slice %247 {offsets = [8, 0], sizes = [4, 128], strides = [1, 1]} : vector<16x128xf32> to vector<4x128xf32>
    %cst_31 = arith.constant 2.000000e+00 : f32
    %251 = vector.broadcast %cst_31 : f32 to vector<4x128xf32>
    %252 = arith.mulf %251, %250 : vector<4x128xf32>
    %cst_32 = arith.constant 1.000000e+00 : f32
    %253 = vector.broadcast %cst_32 : f32 to vector<4x128xf32>
    %254 = arith.subf %252, %253 : vector<4x128xf32>
    %255 = vector.extract_strided_slice %247 {offsets = [12, 0], sizes = [4, 128], strides = [1, 1]} : vector<16x128xf32> to vector<4x128xf32>
    %256 = arith.mulf %249, %217 : vector<4x128xf32>
    %257 = arith.mulf %248, %254 : vector<4x128xf32>
    %258 = arith.addf %256, %257 : vector<4x128xf32>
    %259 = math.tanh %258 : vector<4x128xf32>
    %260 = arith.mulf %255, %259 : vector<4x128xf32>
    %c6 = arith.constant 6 : index
    %c0_33 = arith.constant 0 : index
    %c0_34 = arith.constant 0 : index
    %261 = vector.load %arg1[%c6, %c0_33, %c0_34] : memref<8x16x128xbf16, #tpu.memory_space<vmem>>, vector<1x16x128xbf16>
    %262 = vector.shape_cast %261 : vector<1x16x128xbf16> to vector<16x128xbf16>
    %263 = arith.extf %262 : vector<16x128xbf16> to vector<16x128xf32>
    %264 = vector.extract_strided_slice %260 {offsets = [0, 0], sizes = [1, 128], strides = [1, 1]} : vector<4x128xf32> to vector<1x128xf32>
    %265 = vector.shape_cast %264 : vector<1x128xf32> to vector<1x128xf32>
    %266 = vector.broadcast %265 : vector<1x128xf32> to vector<16x128xf32>
    %267 = vector.extract_strided_slice %260 {offsets = [1, 0], sizes = [1, 128], strides = [1, 1]} : vector<4x128xf32> to vector<1x128xf32>
    %268 = vector.shape_cast %267 : vector<1x128xf32> to vector<1x128xf32>
    %269 = vector.broadcast %268 : vector<1x128xf32> to vector<16x128xf32>
    %270 = vector.extract_strided_slice %260 {offsets = [2, 0], sizes = [1, 128], strides = [1, 1]} : vector<4x128xf32> to vector<1x128xf32>
    %271 = vector.shape_cast %270 : vector<1x128xf32> to vector<1x128xf32>
    %272 = vector.broadcast %271 : vector<1x128xf32> to vector<16x128xf32>
    %273 = vector.extract_strided_slice %260 {offsets = [3, 0], sizes = [1, 128], strides = [1, 1]} : vector<4x128xf32> to vector<1x128xf32>
    %274 = vector.shape_cast %273 : vector<1x128xf32> to vector<1x128xf32>
    %275 = vector.broadcast %274 : vector<1x128xf32> to vector<16x128xf32>
    %276 = arith.mulf %3, %266 : vector<16x128xf32>
    %277 = arith.mulf %6, %269 : vector<16x128xf32>
    %278 = arith.addf %276, %277 : vector<16x128xf32>
    %279 = arith.mulf %9, %272 : vector<16x128xf32>
    %280 = arith.mulf %12, %275 : vector<16x128xf32>
    %281 = arith.addf %279, %280 : vector<16x128xf32>
    %282 = arith.addf %278, %281 : vector<16x128xf32>
    %283 = arith.addf %263, %282 : vector<16x128xf32>
    %284 = arith.negf %283 : vector<16x128xf32>
    %285 = math.exp %284 : vector<16x128xf32>
    %cst_35 = arith.constant 1.000000e+00 : f32
    %286 = vector.broadcast %cst_35 : f32 to vector<16x128xf32>
    %287 = arith.addf %286, %285 : vector<16x128xf32>
    %288 = arith.divf %286, %287 : vector<16x128xf32>
    %289 = vector.extract_strided_slice %288 {offsets = [0, 0], sizes = [4, 128], strides = [1, 1]} : vector<16x128xf32> to vector<4x128xf32>
    %290 = vector.extract_strided_slice %288 {offsets = [4, 0], sizes = [4, 128], strides = [1, 1]} : vector<16x128xf32> to vector<4x128xf32>
    %291 = vector.extract_strided_slice %288 {offsets = [8, 0], sizes = [4, 128], strides = [1, 1]} : vector<16x128xf32> to vector<4x128xf32>
    %cst_36 = arith.constant 2.000000e+00 : f32
    %292 = vector.broadcast %cst_36 : f32 to vector<4x128xf32>
    %293 = arith.mulf %292, %291 : vector<4x128xf32>
    %cst_37 = arith.constant 1.000000e+00 : f32
    %294 = vector.broadcast %cst_37 : f32 to vector<4x128xf32>
    %295 = arith.subf %293, %294 : vector<4x128xf32>
    %296 = vector.extract_strided_slice %288 {offsets = [12, 0], sizes = [4, 128], strides = [1, 1]} : vector<16x128xf32> to vector<4x128xf32>
    %297 = arith.mulf %290, %258 : vector<4x128xf32>
    %298 = arith.mulf %289, %295 : vector<4x128xf32>
    %299 = arith.addf %297, %298 : vector<4x128xf32>
    %300 = math.tanh %299 : vector<4x128xf32>
    %301 = arith.mulf %296, %300 : vector<4x128xf32>
    %c7 = arith.constant 7 : index
    %c0_38 = arith.constant 0 : index
    %c0_39 = arith.constant 0 : index
    %302 = vector.load %arg1[%c7, %c0_38, %c0_39] : memref<8x16x128xbf16, #tpu.memory_space<vmem>>, vector<1x16x128xbf16>
    %303 = vector.shape_cast %302 : vector<1x16x128xbf16> to vector<16x128xbf16>
    %304 = arith.extf %303 : vector<16x128xbf16> to vector<16x128xf32>
    %305 = vector.extract_strided_slice %301 {offsets = [0, 0], sizes = [1, 128], strides = [1, 1]} : vector<4x128xf32> to vector<1x128xf32>
    %306 = vector.shape_cast %305 : vector<1x128xf32> to vector<1x128xf32>
    %307 = vector.broadcast %306 : vector<1x128xf32> to vector<16x128xf32>
    %308 = vector.extract_strided_slice %301 {offsets = [1, 0], sizes = [1, 128], strides = [1, 1]} : vector<4x128xf32> to vector<1x128xf32>
    %309 = vector.shape_cast %308 : vector<1x128xf32> to vector<1x128xf32>
    %310 = vector.broadcast %309 : vector<1x128xf32> to vector<16x128xf32>
    %311 = vector.extract_strided_slice %301 {offsets = [2, 0], sizes = [1, 128], strides = [1, 1]} : vector<4x128xf32> to vector<1x128xf32>
    %312 = vector.shape_cast %311 : vector<1x128xf32> to vector<1x128xf32>
    %313 = vector.broadcast %312 : vector<1x128xf32> to vector<16x128xf32>
    %314 = vector.extract_strided_slice %301 {offsets = [3, 0], sizes = [1, 128], strides = [1, 1]} : vector<4x128xf32> to vector<1x128xf32>
    %315 = vector.shape_cast %314 : vector<1x128xf32> to vector<1x128xf32>
    %316 = vector.broadcast %315 : vector<1x128xf32> to vector<16x128xf32>
    %317 = arith.mulf %3, %307 : vector<16x128xf32>
    %318 = arith.mulf %6, %310 : vector<16x128xf32>
    %319 = arith.addf %317, %318 : vector<16x128xf32>
    %320 = arith.mulf %9, %313 : vector<16x128xf32>
    %321 = arith.mulf %12, %316 : vector<16x128xf32>
    %322 = arith.addf %320, %321 : vector<16x128xf32>
    %323 = arith.addf %319, %322 : vector<16x128xf32>
    %324 = arith.addf %304, %323 : vector<16x128xf32>
    %325 = arith.negf %324 : vector<16x128xf32>
    %326 = math.exp %325 : vector<16x128xf32>
    %cst_40 = arith.constant 1.000000e+00 : f32
    %327 = vector.broadcast %cst_40 : f32 to vector<16x128xf32>
    %328 = arith.addf %327, %326 : vector<16x128xf32>
    %329 = arith.divf %327, %328 : vector<16x128xf32>
    %330 = vector.extract_strided_slice %329 {offsets = [0, 0], sizes = [4, 128], strides = [1, 1]} : vector<16x128xf32> to vector<4x128xf32>
    %331 = vector.extract_strided_slice %329 {offsets = [4, 0], sizes = [4, 128], strides = [1, 1]} : vector<16x128xf32> to vector<4x128xf32>
    %332 = vector.extract_strided_slice %329 {offsets = [8, 0], sizes = [4, 128], strides = [1, 1]} : vector<16x128xf32> to vector<4x128xf32>
    %cst_41 = arith.constant 2.000000e+00 : f32
    %333 = vector.broadcast %cst_41 : f32 to vector<4x128xf32>
    %334 = arith.mulf %333, %332 : vector<4x128xf32>
    %cst_42 = arith.constant 1.000000e+00 : f32
    %335 = vector.broadcast %cst_42 : f32 to vector<4x128xf32>
    %336 = arith.subf %334, %335 : vector<4x128xf32>
    %337 = vector.extract_strided_slice %329 {offsets = [12, 0], sizes = [4, 128], strides = [1, 1]} : vector<16x128xf32> to vector<4x128xf32>
    %338 = arith.mulf %331, %299 : vector<4x128xf32>
    %339 = arith.mulf %330, %336 : vector<4x128xf32>
    %340 = arith.addf %338, %339 : vector<4x128xf32>
    %341 = math.tanh %340 : vector<4x128xf32>
    %342 = arith.mulf %337, %341 : vector<4x128xf32>
    %c0_43 = arith.constant 0 : index
    %c0_44 = arith.constant 0 : index
    %343 = vector.load %arg3[%c0_43, %c0_44] : memref<6x128xf32, #tpu.memory_space<vmem>>, vector<6x128xf32>
    %344 = tpu.concatenate %343, %342 in 0 : vector<6x128xf32>, vector<4x128xf32> -> vector<10x128xf32>
    %c0_45 = arith.constant 0 : index
    %c0_46 = arith.constant 0 : index
    %345 = vector.load %arg4[%c0_45, %c0_46] : memref<16x10xf32, #tpu.memory_space<vmem>>, vector<16x10xf32>
    %cst_47 = arith.constant dense<0.000000e+00> : vector<16x128xf32>
    %346 = tpu.matmul %345, %344, %cst_47 {dimension_numbers = #tpu.dot_dimension_numbers<[1], [0], [0], [1], [0, 0, 1, 1], [], []>} : vector<16x10xf32>, vector<10x128xf32>, vector<16x128xf32> -> vector<16x128xf32>
    %c0_48 = arith.constant 0 : index
    %c0_49 = arith.constant 0 : index
    %347 = vector.load %arg5[%c0_48, %c0_49] : memref<16x1xf32, #tpu.memory_space<vmem>>, vector<16x1xf32>
    %348 = vector.broadcast %347 : vector<16x1xf32> to vector<16x128xf32>
    %349 = arith.addf %346, %348 : vector<16x128xf32>
    %cst_50 = arith.constant 0.000000e+00 : f32
    %350 = vector.broadcast %cst_50 : f32 to vector<16x128xf32>
    %351 = arith.maximumf %349, %350 : vector<16x128xf32>
    %c0_51 = arith.constant 0 : index
    %c0_52 = arith.constant 0 : index
    %352 = vector.load %arg6[%c0_51, %c0_52] : memref<8x16xf32, #tpu.memory_space<vmem>>, vector<8x16xf32>
    %cst_53 = arith.constant dense<0.000000e+00> : vector<8x128xf32>
    %353 = tpu.matmul %352, %351, %cst_53 {dimension_numbers = #tpu.dot_dimension_numbers<[1], [0], [0], [1], [0, 0, 1, 1], [], []>} : vector<8x16xf32>, vector<16x128xf32>, vector<8x128xf32> -> vector<8x128xf32>
    %c0_54 = arith.constant 0 : index
    %c0_55 = arith.constant 0 : index
    %354 = vector.load %arg7[%c0_54, %c0_55] : memref<8x1xf32, #tpu.memory_space<vmem>>, vector<8x1xf32>
    %355 = vector.broadcast %354 : vector<8x1xf32> to vector<8x128xf32>
    %356 = arith.addf %353, %355 : vector<8x128xf32>
    %cst_56 = arith.constant 0.000000e+00 : f32
    %357 = vector.broadcast %cst_56 : f32 to vector<8x128xf32>
    %358 = arith.maximumf %356, %357 : vector<8x128xf32>
    %c0_57 = arith.constant 0 : index
    %c0_58 = arith.constant 0 : index
    %359 = vector.load %arg8[%c0_57, %c0_58] : memref<3x8xf32, #tpu.memory_space<vmem>>, vector<3x8xf32>
    %cst_59 = arith.constant dense<0.000000e+00> : vector<3x128xf32>
    %360 = tpu.matmul %359, %358, %cst_59 {dimension_numbers = #tpu.dot_dimension_numbers<[1], [0], [0], [1], [0, 0, 1, 1], [], []>} : vector<3x8xf32>, vector<8x128xf32>, vector<3x128xf32> -> vector<3x128xf32>
    %c0_60 = arith.constant 0 : index
    %c0_61 = arith.constant 0 : index
    %361 = vector.load %arg9[%c0_60, %c0_61] : memref<3x1xf32, #tpu.memory_space<vmem>>, vector<3x1xf32>
    %362 = vector.broadcast %361 : vector<3x1xf32> to vector<3x128xf32>
    %363 = arith.addf %360, %362 : vector<3x128xf32>
    %c0_62 = arith.constant 0 : index
    %c0_63 = arith.constant 0 : index
    %364 = vector.load %arg10[%c0_62, %c0_63] : memref<3x128xf32, #tpu.memory_space<vmem>>, vector<3x128xf32>
    tpu.vector_store %arg10[%c0_62, %c0_63], %363 {strides = array<i32>} : memref<3x128xf32, #tpu.memory_space<vmem>>, vector<3x128xf32>,
    return
  }
  func.func @transform_0(%arg0: i32) -> (i32, i32, i32) {
    %c0_i32 = arith.constant 0 : i32
    %c0_i32_0 = arith.constant 0 : i32
    %c0_i32_1 = arith.constant 0 : i32
    return %c0_i32, %c0_i32_0, %arg0 : i32, i32, i32
  }
  func.func @transform_1(%arg0: i32) -> (i32, i32) {
    %c0_i32 = arith.constant 0 : i32
    %c0_i32_0 = arith.constant 0 : i32
    %c0_i32_1 = arith.constant 0 : i32
    return %c0_i32, %c0_i32_0 : i32, i32
  }
  func.func @transform_2(%arg0: i32) -> (i32, i32) {
    %c0_i32 = arith.constant 0 : i32
    %c0_i32_0 = arith.constant 0 : i32
    return %c0_i32, %arg0 : i32, i32
  }
  func.func @transform_3(%arg0: i32) -> (i32, i32) {
    %c0_i32 = arith.constant 0 : i32
    %c0_i32_0 = arith.constant 0 : i32
    %c0_i32_1 = arith.constant 0 : i32
    return %c0_i32, %c0_i32_0 : i32, i32
  }
  func.func @transform_4(%arg0: i32) -> (i32, i32) {
    %c0_i32 = arith.constant 0 : i32
    %c0_i32_0 = arith.constant 0 : i32
    %c0_i32_1 = arith.constant 0 : i32
    return %c0_i32, %c0_i32_0 : i32, i32
  }
  func.func @transform_5(%arg0: i32) -> (i32, i32) {
    %c0_i32 = arith.constant 0 : i32
    %c0_i32_0 = arith.constant 0 : i32
    %c0_i32_1 = arith.constant 0 : i32
    return %c0_i32, %c0_i32_0 : i32, i32
  }
  func.func @transform_6(%arg0: i32) -> (i32, i32) {
    %c0_i32 = arith.constant 0 : i32
    %c0_i32_0 = arith.constant 0 : i32
    %c0_i32_1 = arith.constant 0 : i32
    return %c0_i32, %c0_i32_0 : i32, i32
  }
  func.func @transform_7(%arg0: i32) -> (i32, i32) {
    %c0_i32 = arith.constant 0 : i32
    %c0_i32_0 = arith.constant 0 : i32
    %c0_i32_1 = arith.constant 0 : i32
    return %c0_i32, %c0_i32_0 : i32, i32
  }
  func.func @transform_8(%arg0: i32) -> (i32, i32) {
    %c0_i32 = arith.constant 0 : i32
    %c0_i32_0 = arith.constant 0 : i32
    %c0_i32_1 = arith.constant 0 : i32
    return %c0_i32, %c0_i32_0 : i32, i32
  }
  func.func @transform_9(%arg0: i32) -> (i32, i32) {
    %c0_i32 = arith.constant 0 : i32
    %c0_i32_0 = arith.constant 0 : i32
    return %c0_i32, %arg0 : i32, i32
  }
}

</mosaic_0001>

<llo_original>
// kernel: lstm_iqvia_paper_forward.1
$region0: #{lstm_iqvia_paper_forward.1}
  #allocation0 [shape = 'u32[]', space=smem, size = 0x4, offset = 0x4, fixed_abs, tag = 'smem constant byte address 0x4 - core index']
  #allocation1 [shape = 'u32[144,128]{1,0:T(1,128)}', space=vmem, size = 0x12000, scoped, tag = 'internal scratch']
  %s0 = inlined_call_operand.vmem [shape: bf16[8,16,128], index: 0, kind: input, shape index: {}]
  %s1 = inlined_call_operand.vmem [shape: f32[16,4], index: 1, kind: input, shape index: {}]
  %s2 = inlined_call_operand.vmem [shape: f32[6,128], index: 2, kind: input, shape index: {}]
  %s3 = inlined_call_operand.vmem [shape: f32[16,10], index: 3, kind: input, shape index: {}]
  %s4 = inlined_call_operand.vmem [shape: f32[16,1], index: 4, kind: input, shape index: {}]
  %s5 = inlined_call_operand.vmem [shape: f32[8,16], index: 5, kind: input, shape index: {}]
  %s6 = inlined_call_operand.vmem [shape: f32[8,1], index: 6, kind: input, shape index: {}]
  %s7 = inlined_call_operand.vmem [shape: f32[3,8], index: 7, kind: input, shape index: {}]
  %s8 = inlined_call_operand.vmem [shape: f32[3,1], index: 8, kind: input, shape index: {}]
  %s9 = inlined_call_operand.vmem [shape: f32[3,128], index: 9, kind: output, shape index: {}]
  %s10 = sld [smem:[#allocation0]]
  $region46: #{lstm_iqvia_paper_forward.1} parent=0
    _
  %s12 = ssub.s32 1, %s10
  %s13 = scalar_select 0, %s12, %s10
  // Predicated region
  $region2: #{lstm_iqvia_paper_forward.1} parent=0 // pred_check
    _
  $region3: #{lstm_iqvia_paper_forward.1} parent=0 // pred_check_branch
    %15 = sbr.rel (0) target = $region5
  $region4: #{lstm_iqvia_paper_forward.1} parent=0 // pred_region
    _
  $region5: #{lstm_iqvia_paper_forward.1} parent=0 // pred_fallthru
    _
  // Predicated region
  $region6: #{lstm_iqvia_paper_forward.1} parent=0 // pred_check
    _
  $region7: #{lstm_iqvia_paper_forward.1} parent=0 // pred_check_branch
    %17 = sbr.rel (0) target = $region9
  $region8: #{lstm_iqvia_paper_forward.1} parent=0 // pred_region
    _
  $region9: #{lstm_iqvia_paper_forward.1} parent=0 // pred_fallthru
    _
  // Predicated region
  $region10: #{lstm_iqvia_paper_forward.1} parent=0 // pred_check
    _
  $region11: #{lstm_iqvia_paper_forward.1} parent=0 // pred_check_branch
    %19 = sbr.rel (0) target = $region13
  $region12: #{lstm_iqvia_paper_forward.1} parent=0 // pred_region
    _
  $region13: #{lstm_iqvia_paper_forward.1} parent=0 // pred_fallthru
    _
  // Predicated region
  $region14: #{lstm_iqvia_paper_forward.1} parent=0 // pred_check
    _
  $region15: #{lstm_iqvia_paper_forward.1} parent=0 // pred_check_branch
    %21 = sbr.rel (0) target = $region17
  $region16: #{lstm_iqvia_paper_forward.1} parent=0 // pred_region
    _
  $region17: #{lstm_iqvia_paper_forward.1} parent=0 // pred_fallthru
    _
  // Predicated region
  $region18: #{lstm_iqvia_paper_forward.1} parent=0 // pred_check
    _
  $region19: #{lstm_iqvia_paper_forward.1} parent=0 // pred_check_branch
    %23 = sbr.rel (0) target = $region21
  $region20: #{lstm_iqvia_paper_forward.1} parent=0 // pred_region
    _
  $region21: #{lstm_iqvia_paper_forward.1} parent=0 // pred_fallthru
    _
  // Predicated region
  $region22: #{lstm_iqvia_paper_forward.1} parent=0 // pred_check
    _
  $region23: #{lstm_iqvia_paper_forward.1} parent=0 // pred_check_branch
    %25 = sbr.rel (0) target = $region25
  $region24: #{lstm_iqvia_paper_forward.1} parent=0 // pred_region
    _
  $region25: #{lstm_iqvia_paper_forward.1} parent=0 // pred_fallthru
    _
  // Predicated region
  $region26: #{lstm_iqvia_paper_forward.1} parent=0 // pred_check
    _
  $region27: #{lstm_iqvia_paper_forward.1} parent=0 // pred_check_branch
    %27 = sbr.rel (0) target = $region29
  $region28: #{lstm_iqvia_paper_forward.1} parent=0 // pred_region
    _
  $region29: #{lstm_iqvia_paper_forward.1} parent=0 // pred_fallthru
    _
  // Predicated region
  $region30: #{lstm_iqvia_paper_forward.1} parent=0 // pred_check
    _
  $region31: #{lstm_iqvia_paper_forward.1} parent=0 // pred_check_branch
    %29 = sbr.rel (0) target = $region33
  $region32: #{lstm_iqvia_paper_forward.1} parent=0 // pred_region
    _
  $region33: #{lstm_iqvia_paper_forward.1} parent=0 // pred_fallthru
    _
  // Predicated region
  $region34: #{lstm_iqvia_paper_forward.1} parent=0 // pred_check
    _
  $region35: #{lstm_iqvia_paper_forward.1} parent=0 // pred_check_branch
    %31 = sbr.rel (0) target = $region37
  $region36: #{lstm_iqvia_paper_forward.1} parent=0 // pred_region
    _
  $region37: #{lstm_iqvia_paper_forward.1} parent=0 // pred_fallthru
    _
  %v32 = vld [vmem:[%s1] sm:$0xff]
  %v33 = vld [vmem:[%s1 + $0x8] sm:$0xff]
  %35 = vset.pattern.permute.xlu0 0
  %36 = vperm.xlu0 %35, %v32
  %v37 = vpop.permute.xlu0 %36
  %40 = vset.pattern.permute.xlu0 0
  %41 = vperm.xlu0 %40, %v33
  %v42 = vpop.permute.xlu0 %41
  %44 = vset.pattern.permute.xlu0 1
  %45 = vperm.xlu0 %44, %v32
  %v46 = vpop.permute.xlu0 %45
  %48 = vset.pattern.permute.xlu0 1
  %49 = vperm.xlu0 %48, %v33
  %v50 = vpop.permute.xlu0 %49
  %52 = vset.pattern.permute.xlu0 2
  %53 = vperm.xlu0 %52, %v32
  %v54 = vpop.permute.xlu0 %53
  %56 = vset.pattern.permute.xlu0 2
  %57 = vperm.xlu0 %56, %v33
  %v58 = vpop.permute.xlu0 %57
  %60 = vset.pattern.permute.xlu0 3
  %61 = vperm.xlu0 %60, %v32
  %v62 = vpop.permute.xlu0 %61
  %64 = vset.pattern.permute.xlu0 3
  %65 = vperm.xlu0 %64, %v33
  %v66 = vpop.permute.xlu0 %65
  %v68 = vld [vmem:[%s0] sm:$0xf]
  %v69 = vld [vmem:[%s0 + $0x4] sm:$0xf]
  %v70 = vunpack.c.l.bf16 %v68
  %v71 = vunpack.c.l.bf16 %v69
  %v72 = vmul.f32 %v37, 0.0
  %v73 = vmul.f32 %v42, 0.0
  %v74 = vmul.f32 %v46, 0.0
  %v75 = vmul.f32 %v50, 0.0
  %v76 = vadd.f32 %v72, %v74
  %v77 = vadd.f32 %v73, %v75
  %v78 = vmul.f32 %v54, 0.0
  %v79 = vmul.f32 %v58, 0.0
  %v80 = vmul.f32 %v62, 0.0
  %v81 = vmul.f32 %v66, 0.0
  %v82 = vadd.f32 %v78, %v80
  %v83 = vadd.f32 %v79, %v81
  %v84 = vadd.f32 %v76, %v82
  %v85 = vadd.f32 %v77, %v83
  %v86 = vadd.f32 %v70, %v84
  %v87 = vadd.f32 %v71, %v85
  %v88 = vxor.u32 %v86, 2147483648
  %v89 = vxor.u32 %v87, 2147483648
  %v90 = vmul.f32 %v88, 1.442695
  %v91 = vpow.pop %v90
  %v92 = vmul.f32 %v89, 1.442695
  %v93 = vpow.pop %v92
  %v94 = vadd.f32 %v91, 1.0
  %v95 = vadd.f32 %v93, 1.0
  %v96 = vrcp.pop %v94
  %v97 = vmul.f32 1.0, %v96
  %v98 = vrcp.pop %v95
  %v99 = vmul.f32 1.0, %v98
  %v100 = vmul.f32 %v99, 2.0
  %v101 = vsub.f32 %v100, 1.0
  %v102 = vmul.f32 %v97, 0.0
  %v103 = vmul.f32 %v97, %v101
  %v105 = vrot.slane %v103, 4
  %v107 = vadd.f32 %v102, %v105
  %v108 = vtanh.pop %v107
  %v109 = vmul.f32 %v99, %v108
  %s110 = scalar_lea.vmem %s0, 8
  %v111 = vld [vmem:[%s110] sm:$0xf]
  %v112 = vld [vmem:[%s110 + $0x4] sm:$0xf]
  %v113 = vunpack.c.l.bf16 %v111
  %v114 = vunpack.c.l.bf16 %v112
  %v115 = vlaneseq
  %v116 = vshrl.u32 %v115, 7
  %v117 = vsub.s32 4, %v116
  %v118 = vrot.slane %v109, %v117
  %v119 = vlaneseq
  %v120 = vshrl.u32 %v119, 7
  %v121 = vsub.s32 5, %v120
  %v122 = vrot.slane %v109, %v121
  %v123 = vlaneseq
  %v124 = vshrl.u32 %v123, 7
  %v125 = vsub.s32 6, %v124
  %v126 = vrot.slane %v109, %v125
  %v127 = vlaneseq
  %v128 = vshrl.u32 %v127, 7
  %v129 = vsub.s32 7, %v128
  %v130 = vrot.slane %v109, %v129
  %v131 = vmul.f32 %v37, %v118
  %v132 = vmul.f32 %v42, %v118
  %v133 = vmul.f32 %v46, %v122
  %v134 = vmul.f32 %v50, %v122
  %v135 = vadd.f32 %v131, %v133
  %v136 = vadd.f32 %v132, %v134
  %v137 = vmul.f32 %v54, %v126
  %v138 = vmul.f32 %v58, %v126
  %v139 = vmul.f32 %v62, %v130
  %v140 = vmul.f32 %v66, %v130
  %v141 = vadd.f32 %v137, %v139
  %v142 = vadd.f32 %v138, %v140
  %v143 = vadd.f32 %v135, %v141
  %v144 = vadd.f32 %v136, %v142
  %v145 = vadd.f32 %v113, %v143
  %v146 = vadd.f32 %v114, %v144
  %v147 = vxor.u32 %v145, 2147483648
  %v148 = vxor.u32 %v146, 2147483648
  %v149 = vmul.f32 %v147, 1.442695
  %v150 = vpow.pop %v149
  %v151 = vmul.f32 %v148, 1.442695
  %v152 = vpow.pop %v151
  %v153 = vadd.f32 %v150, 1.0
  %v154 = vadd.f32 %v152, 1.0
  %v155 = vrcp.pop %v153
  %v156 = vmul.f32 1.0, %v155
  %v157 = vrcp.pop %v154
  %v158 = vmul.f32 1.0, %v157
  %v159 = vmul.f32 %v158, 2.0
  %v160 = vsub.f32 %v159, 1.0
  %v161 = vmul.f32 %v156, %v107
  %v162 = vmul.f32 %v156, %v160
  %v164 = vrot.slane %v162, 4
  %v166 = vadd.f32 %v161, %v164
  %v167 = vtanh.pop %v166
  %v168 = vmul.f32 %v158, %v167
  %s169 = scalar_lea.vmem %s0, 16
  %v170 = vld [vmem:[%s169] sm:$0xf]
  %v171 = vld [vmem:[%s169 + $0x4] sm:$0xf]
  %v172 = vunpack.c.l.bf16 %v170
  %v173 = vunpack.c.l.bf16 %v171
  %v174 = vlaneseq
  %v175 = vshrl.u32 %v174, 7
  %v176 = vsub.s32 4, %v175
  %v177 = vrot.slane %v168, %v176
  %v178 = vlaneseq
  %v179 = vshrl.u32 %v178, 7
  %v180 = vsub.s32 5, %v179
  %v181 = vrot.slane %v168, %v180
  %v182 = vlaneseq
  %v183 = vshrl.u32 %v182, 7
  %v184 = vsub.s32 6, %v183
  %v185 = vrot.slane %v168, %v184
  %v186 = vlaneseq
  %v187 = vshrl.u32 %v186, 7
  %v188 = vsub.s32 7, %v187
  %v189 = vrot.slane %v168, %v188
  %v190 = vmul.f32 %v37, %v177
  %v191 = vmul.f32 %v42, %v177
  %v192 = vmul.f32 %v46, %v181
  %v193 = vmul.f32 %v50, %v181
  %v194 = vadd.f32 %v190, %v192
  %v195 = vadd.f32 %v191, %v193
  %v196 = vmul.f32 %v54, %v185
  %v197 = vmul.f32 %v58, %v185
  %v198 = vmul.f32 %v62, %v189
  %v199 = vmul.f32 %v66, %v189
  %v200 = vadd.f32 %v196, %v198
  %v201 = vadd.f32 %v197, %v199
  %v202 = vadd.f32 %v194, %v200
  %v203 = vadd.f32 %v195, %v201
  %v204 = vadd.f32 %v172, %v202
  %v205 = vadd.f32 %v173, %v203
  %v206 = vxor.u32 %v204, 2147483648
  %v207 = vxor.u32 %v205, 2147483648
  %v208 = vmul.f32 %v206, 1.442695
  %v209 = vpow.pop %v208
  %v210 = vmul.f32 %v207, 1.442695
  %v211 = vpow.pop %v210
  %v212 = vadd.f32 %v209, 1.0
  %v213 = vadd.f32 %v211, 1.0
  %v214 = vrcp.pop %v212
  %v215 = vmul.f32 1.0, %v214
  %v216 = vrcp.pop %v213
  %v217 = vmul.f32 1.0, %v216
  %v218 = vmul.f32 %v217, 2.0
  %v219 = vsub.f32 %v218, 1.0
  %v220 = vmul.f32 %v215, %v166
  %v221 = vmul.f32 %v215, %v219
  %v223 = vrot.slane %v221, 4
  %v225 = vadd.f32 %v220, %v223
  %v226 = vtanh.pop %v225
  %v227 = vmul.f32 %v217, %v226
  %s228 = scalar_lea.vmem %s0, 24
  %v229 = vld [vmem:[%s228] sm:$0xf]
  %v230 = vld [vmem:[%s228 + $0x4] sm:$0xf]
  %v231 = vunpack.c.l.bf16 %v229
  %v232 = vunpack.c.l.bf16 %v230
  %v233 = vlaneseq
  %v234 = vshrl.u32 %v233, 7
  %v235 = vsub.s32 4, %v234
  %v236 = vrot.slane %v227, %v235
  %v237 = vlaneseq
  %v238 = vshrl.u32 %v237, 7
  %v239 = vsub.s32 5, %v238
  %v240 = vrot.slane %v227, %v239
  %v241 = vlaneseq
  %v242 = vshrl.u32 %v241, 7
  %v243 = vsub.s32 6, %v242
  %v244 = vrot.slane %v227, %v243
  %v245 = vlaneseq
  %v246 = vshrl.u32 %v245, 7
  %v247 = vsub.s32 7, %v246
  %v248 = vrot.slane %v227, %v247
  %v249 = vmul.f32 %v37, %v236
  %v250 = vmul.f32 %v42, %v236
  %v251 = vmul.f32 %v46, %v240
  %v252 = vmul.f32 %v50, %v240
  %v253 = vadd.f32 %v249, %v251
  %v254 = vadd.f32 %v250, %v252
  %v255 = vmul.f32 %v54, %v244
  %v256 = vmul.f32 %v58, %v244
  %v257 = vmul.f32 %v62, %v248
  %v258 = vmul.f32 %v66, %v248
  %v259 = vadd.f32 %v255, %v257
  %v260 = vadd.f32 %v256, %v258
  %v261 = vadd.f32 %v253, %v259
  %v262 = vadd.f32 %v254, %v260
  %v263 = vadd.f32 %v231, %v261
  %v264 = vadd.f32 %v232, %v262
  %v265 = vxor.u32 %v263, 2147483648
  %v266 = vxor.u32 %v264, 2147483648
  %v267 = vmul.f32 %v265, 1.442695
  %v268 = vpow.pop %v267
  %v269 = vmul.f32 %v266, 1.442695
  %v270 = vpow.pop %v269
  %v271 = vadd.f32 %v268, 1.0
  %v272 = vadd.f32 %v270, 1.0
  %v273 = vrcp.pop %v271
  %v274 = vmul.f32 1.0, %v273
  %v275 = vrcp.pop %v272
  %v276 = vmul.f32 1.0, %v275
  %v277 = vmul.f32 %v276, 2.0
  %v278 = vsub.f32 %v277, 1.0
  %v279 = vmul.f32 %v274, %v225
  %v280 = vmul.f32 %v274, %v278
  %v282 = vrot.slane %v280, 4
  %v284 = vadd.f32 %v279, %v282
  %v285 = vtanh.pop %v284
  %v286 = vmul.f32 %v276, %v285
  %s287 = scalar_lea.vmem %s0, 32
  %v288 = vld [vmem:[%s287] sm:$0xf]
  %v289 = vld [vmem:[%s287 + $0x4] sm:$0xf]
  %v290 = vunpack.c.l.bf16 %v288
  %v291 = vunpack.c.l.bf16 %v289
  %v292 = vlaneseq
  %v293 = vshrl.u32 %v292, 7
  %v294 = vsub.s32 4, %v293
  %v295 = vrot.slane %v286, %v294
  %v296 = vlaneseq
  %v297 = vshrl.u32 %v296, 7
  %v298 = vsub.s32 5, %v297
  %v299 = vrot.slane %v286, %v298
  %v300 = vlaneseq
  %v301 = vshrl.u32 %v300, 7
  %v302 = vsub.s32 6, %v301
  %v303 = vrot.slane %v286, %v302
  %v304 = vlaneseq
  %v305 = vshrl.u32 %v304, 7
  %v306 = vsub.s32 7, %v305
  %v307 = vrot.slane %v286, %v306
  %v308 = vmul.f32 %v37, %v295
  %v309 = vmul.f32 %v42, %v295
  %v310 = vmul.f32 %v46, %v299
  %v311 = vmul.f32 %v50, %v299
  %v312 = vadd.f32 %v308, %v310
  %v313 = vadd.f32 %v309, %v311
  %v314 = vmul.f32 %v54, %v303
  %v315 = vmul.f32 %v58, %v303
  %v316 = vmul.f32 %v62, %v307
  %v317 = vmul.f32 %v66, %v307
  %v318 = vadd.f32 %v314, %v316
  %v319 = vadd.f32 %v315, %v317
  %v320 = vadd.f32 %v312, %v318
  %v321 = vadd.f32 %v313, %v319
  %v322 = vadd.f32 %v290, %v320
  %v323 = vadd.f32 %v291, %v321
  %v324 = vxor.u32 %v322, 2147483648
  %v325 = vxor.u32 %v323, 2147483648
  %v326 = vmul.f32 %v324, 1.442695
  %v327 = vpow.pop %v326
  %v328 = vmul.f32 %v325, 1.442695
  %v329 = vpow.pop %v328
  %v330 = vadd.f32 %v327, 1.0
  %v331 = vadd.f32 %v329, 1.0
  %v332 = vrcp.pop %v330
  %v333 = vmul.f32 1.0, %v332
  %v334 = vrcp.pop %v331
  %v335 = vmul.f32 1.0, %v334
  %v336 = vmul.f32 %v335, 2.0
  %v337 = vsub.f32 %v336, 1.0
  %v338 = vmul.f32 %v333, %v284
  %v339 = vmul.f32 %v333, %v337
  %v341 = vrot.slane %v339, 4
  %v343 = vadd.f32 %v338, %v341
  %v344 = vtanh.pop %v343
  %v345 = vmul.f32 %v335, %v344
  %s346 = scalar_lea.vmem %s0, 40
  %v347 = vld [vmem:[%s346] sm:$0xf]
  %v348 = vld [vmem:[%s346 + $0x4] sm:$0xf]
  %v349 = vunpack.c.l.bf16 %v347
  %v350 = vunpack.c.l.bf16 %v348
  %v351 = vlaneseq
  %v352 = vshrl.u32 %v351, 7
  %v353 = vsub.s32 4, %v352
  %v354 = vrot.slane %v345, %v353
  %v355 = vlaneseq
  %v356 = vshrl.u32 %v355, 7
  %v357 = vsub.s32 5, %v356
  %v358 = vrot.slane %v345, %v357
  %v359 = vlaneseq
  %v360 = vshrl.u32 %v359, 7
  %v361 = vsub.s32 6, %v360
  %v362 = vrot.slane %v345, %v361
  %v363 = vlaneseq
  %v364 = vshrl.u32 %v363, 7
  %v365 = vsub.s32 7, %v364
  %v366 = vrot.slane %v345, %v365
  %v367 = vmul.f32 %v37, %v354
  %v368 = vmul.f32 %v42, %v354
  %v369 = vmul.f32 %v46, %v358
  %v370 = vmul.f32 %v50, %v358
  %v371 = vadd.f32 %v367, %v369
  %v372 = vadd.f32 %v368, %v370
  %v373 = vmul.f32 %v54, %v362
  %v374 = vmul.f32 %v58, %v362
  %v375 = vmul.f32 %v62, %v366
  %v376 = vmul.f32 %v66, %v366
  %v377 = vadd.f32 %v373, %v375
  %v378 = vadd.f32 %v374, %v376
  %v379 = vadd.f32 %v371, %v377
  %v380 = vadd.f32 %v372, %v378
  %v381 = vadd.f32 %v349, %v379
  %v382 = vadd.f32 %v350, %v380
  %v383 = vxor.u32 %v381, 2147483648
  %v384 = vxor.u32 %v382, 2147483648
  %v385 = vmul.f32 %v383, 1.442695
  %v386 = vpow.pop %v385
  %v387 = vmul.f32 %v384, 1.442695
  %v388 = vpow.pop %v387
  %v389 = vadd.f32 %v386, 1.0
  %v390 = vadd.f32 %v388, 1.0
  %v391 = vrcp.pop %v389
  %v392 = vmul.f32 1.0, %v391
  %v393 = vrcp.pop %v390
  %v394 = vmul.f32 1.0, %v393
  %v395 = vmul.f32 %v394, 2.0
  %v396 = vsub.f32 %v395, 1.0
  %v397 = vmul.f32 %v392, %v343
  %v398 = vmul.f32 %v392, %v396
  %v400 = vrot.slane %v398, 4
  %v402 = vadd.f32 %v397, %v400
  %v403 = vtanh.pop %v402
  %v404 = vmul.f32 %v394, %v403
  %s405 = scalar_lea.vmem %s0, 48
  %v406 = vld [vmem:[%s405] sm:$0xf]
  %v407 = vld [vmem:[%s405 + $0x4] sm:$0xf]
  %v408 = vunpack.c.l.bf16 %v406
  %v409 = vunpack.c.l.bf16 %v407
  %v410 = vlaneseq
  %v411 = vshrl.u32 %v410, 7
  %v412 = vsub.s32 4, %v411
  %v413 = vrot.slane %v404, %v412
  %v414 = vlaneseq
  %v415 = vshrl.u32 %v414, 7
  %v416 = vsub.s32 5, %v415
  %v417 = vrot.slane %v404, %v416
  %v418 = vlaneseq
  %v419 = vshrl.u32 %v418, 7
  %v420 = vsub.s32 6, %v419
  %v421 = vrot.slane %v404, %v420
  %v422 = vlaneseq
  %v423 = vshrl.u32 %v422, 7
  %v424 = vsub.s32 7, %v423
  %v425 = vrot.slane %v404, %v424
  %v426 = vmul.f32 %v37, %v413
  %v427 = vmul.f32 %v42, %v413
  %v428 = vmul.f32 %v46, %v417
  %v429 = vmul.f32 %v50, %v417
  %v430 = vadd.f32 %v426, %v428
  %v431 = vadd.f32 %v427, %v429
  %v432 = vmul.f32 %v54, %v421
  %v433 = vmul.f32 %v58, %v421
  %v434 = vmul.f32 %v62, %v425
  %v435 = vmul.f32 %v66, %v425
  %v436 = vadd.f32 %v432, %v434
  %v437 = vadd.f32 %v433, %v435
  %v438 = vadd.f32 %v430, %v436
  %v439 = vadd.f32 %v431, %v437
  %v440 = vadd.f32 %v408, %v438
  %v441 = vadd.f32 %v409, %v439
  %v442 = vxor.u32 %v440, 2147483648
  %v443 = vxor.u32 %v441, 2147483648
  %v444 = vmul.f32 %v442, 1.442695
  %v445 = vpow.pop %v444
  %v446 = vmul.f32 %v443, 1.442695
  %v447 = vpow.pop %v446
  %v448 = vadd.f32 %v445, 1.0
  %v449 = vadd.f32 %v447, 1.0
  %v450 = vrcp.pop %v448
  %v451 = vmul.f32 1.0, %v450
  %v452 = vrcp.pop %v449
  %v453 = vmul.f32 1.0, %v452
  %v454 = vmul.f32 %v453, 2.0
  %v455 = vsub.f32 %v454, 1.0
  %v456 = vmul.f32 %v451, %v402
  %v457 = vmul.f32 %v451, %v455
  %v459 = vrot.slane %v457, 4
  %v461 = vadd.f32 %v456, %v459
  %v462 = vtanh.pop %v461
  %v463 = vmul.f32 %v453, %v462
  %s464 = scalar_lea.vmem %s0, 56
  %v465 = vld [vmem:[%s464] sm:$0xf]
  %v466 = vld [vmem:[%s464 + $0x4] sm:$0xf]
  %v467 = vunpack.c.l.bf16 %v465
  %v468 = vunpack.c.l.bf16 %v466
  %v469 = vlaneseq
  %v470 = vshrl.u32 %v469, 7
  %v471 = vsub.s32 4, %v470
  %v472 = vrot.slane %v463, %v471
  %v473 = vlaneseq
  %v474 = vshrl.u32 %v473, 7
  %v475 = vsub.s32 5, %v474
  %v476 = vrot.slane %v463, %v475
  %v477 = vlaneseq
  %v478 = vshrl.u32 %v477, 7
  %v479 = vsub.s32 6, %v478
  %v480 = vrot.slane %v463, %v479
  %v481 = vlaneseq
  %v482 = vshrl.u32 %v481, 7
  %v483 = vsub.s32 7, %v482
  %v484 = vrot.slane %v463, %v483
  %v485 = vmul.f32 %v37, %v472
  %v486 = vmul.f32 %v42, %v472
  %v487 = vmul.f32 %v46, %v476
  %v488 = vmul.f32 %v50, %v476
  %v489 = vadd.f32 %v485, %v487
  %v490 = vadd.f32 %v486, %v488
  %v491 = vmul.f32 %v54, %v480
  %v492 = vmul.f32 %v58, %v480
  %v493 = vmul.f32 %v62, %v484
  %v494 = vmul.f32 %v66, %v484
  %v495 = vadd.f32 %v491, %v493
  %v496 = vadd.f32 %v492, %v494
  %v497 = vadd.f32 %v489, %v495
  %v498 = vadd.f32 %v490, %v496
  %v499 = vadd.f32 %v467, %v497
  %v500 = vadd.f32 %v468, %v498
  %v501 = vxor.u32 %v499, 2147483648
  %v502 = vxor.u32 %v500, 2147483648
  %v503 = vmul.f32 %v501, 1.442695
  %v504 = vpow.pop %v503
  %v505 = vmul.f32 %v502, 1.442695
  %v506 = vpow.pop %v505
  %v507 = vadd.f32 %v504, 1.0
  %v508 = vadd.f32 %v506, 1.0
  %v509 = vrcp.pop %v507
  %v510 = vmul.f32 1.0, %v509
  %v511 = vrcp.pop %v508
  %v512 = vmul.f32 1.0, %v511
  %v513 = vmul.f32 %v512, 2.0
  %v514 = vsub.f32 %v513, 1.0
  %v515 = vmul.f32 %v510, %v461
  %v516 = vmul.f32 %v510, %v514
  %v518 = vrot.slane %v516, 4
  %v520 = vadd.f32 %v515, %v518
  %v521 = vtanh.pop %v520
  %v522 = vmul.f32 %v512, %v521
  %v523 = vld [vmem:[%s2] sm:$0x3f]
  %v525 = vrot.slane %v522, 6
  %vm527 = vcmask 1045504
  %v528 = vsel %vm527, %v523, %v525
  %v529 = vld [vmem:[%s3] sm:$0xff]
  %v530 = vld [vmem:[%s3 + $0x8] sm:$0xff]
  %v531 = vld [vmem:[%s4] sm:$0xff]
  %v532 = vld [vmem:[%s4 + $0x8] sm:$0xff]
  %534 = vset.pattern.permute.xlu0 0
  %535 = vperm.xlu0 %534, %v531
  %v536 = vpop.permute.xlu0 %535
  %539 = vset.pattern.permute.xlu0 0
  %540 = vperm.xlu0 %539, %v532
  %v541 = vpop.permute.xlu0 %540
  %vm543 = vcmask 80896
  %v545 = vsel %vm543, %v529, 0
  %v548 = vsel %vm543, %v530, 0
  %vm550 = vcmask 1041408
  %v551 = vsel %vm550, %v525, 0
  %553 = vmatprep.subr.mxu0 0.0
  %554 = vmatpush1.msra.mxu0 %v528
  %555 = vmatprep.subr.mxu0 0.0
  %556 = vmatpush1.msra.mxu0 %v551
  %557 = vmatprep.subr.mxu0 0.0
  %558 = vmatpush1.msra.mxu0 0.0
  %559 = vmatprep.subr.mxu0 0.0
  %560 = vmatpush1.msra.mxu0 0.0
  %561 = vmatprep.subr.mxu0 0.0
  %562 = vmatpush1.msra.mxu0 0.0
  %563 = vmatprep.subr.mxu0 0.0
  %564 = vmatpush1.msra.mxu0 0.0
  %565 = vmatprep.subr.mxu0 0.0
  %566 = vmatpush1.msra.mxu0 0.0
  %567 = vmatprep.subr.mxu0 0.0
  %568 = vmatpush1.msra.mxu0 0.0
  %569 = vmatprep.subr.mxu0 0.0
  %570 = vmatpush1.msra.mxu0 0.0
  %571 = vmatprep.subr.mxu0 0.0
  %572 = vmatpush1.msra.mxu0 0.0
  %573 = vmatprep.subr.mxu0 0.0
  %574 = vmatpush1.msra.mxu0 0.0
  %575 = vmatprep.subr.mxu0 0.0
  %576 = vmatpush1.msra.mxu0 0.0
  %577 = vmatprep.subr.mxu0 0.0
  %578 = vmatpush1.msra.mxu0 0.0
  %579 = vmatprep.subr.mxu0 0.0
  %580 = vmatpush1.msra.mxu0 0.0
  %581 = vmatprep.subr.mxu0 0.0
  %582 = vmatpush1.msra.mxu0 0.0
  %583 = vmatprep.subr.mxu0 0.0
  %584 = vmatpush1.msra.mxu0 0.0
  %585 = vmatprep.subr.mxu0 0.0
  %586 = vmatpush1.msra.mxu0 0.0
  %587 = vmatprep.subr.mxu0 0.0
  %588 = vmatpush1.msra.mxu0 0.0
  %589 = vmatprep.subr.mxu0 0.0
  %590 = vmatpush1.msra.mxu0 0.0
  %591 = vmatprep.subr.mxu0 0.0
  %592 = vmatpush1.msra.mxu0 0.0
  %593 = vmatprep.subr.mxu0 0.0
  %594 = vmatpush1.msra.mxu0 0.0
  %595 = vmatprep.subr.mxu0 0.0
  %596 = vmatpush1.msra.mxu0 0.0
  %597 = vmatprep.subr.mxu0 0.0
  %598 = vmatpush1.msra.mxu0 0.0
  %599 = vmatprep.subr.mxu0 0.0
  %600 = vmatpush1.msra.mxu0 0.0
  %601 = vmatprep.subr.mxu0 0.0
  %602 = vmatpush1.msra.mxu0 0.0
  %603 = vmatprep.subr.mxu0 0.0
  %604 = vmatpush1.msra.mxu0 0.0
  %605 = vmatprep.subr.mxu0 0.0
  %606 = vmatpush1.msra.mxu0 0.0
  %607 = vmatprep.subr.mxu0 0.0
  %608 = vmatpush1.msra.mxu0 0.0
  %609 = vmatprep.subr.mxu0 0.0
  %610 = vmatpush1.msra.mxu0 0.0
  %611 = vmatprep.subr.mxu0 0.0
  %612 = vmatpush1.msra.mxu0 0.0
  %613 = vmatprep.subr.mxu0 0.0
  %614 = vmatpush1.msra.mxu0 0.0
  %615 = vmatprep.subr.mxu0 0.0
  %616 = vmatpush1.msra.mxu0 0.0
  %617 = vmatprep.mubr.f32.mxu0 0.0
  %618 = vmatmul.mubr.f32.gmra.mrb[0].mxu0 %v545
  %v619 = vpop.f32.mrb[0].mxu0
  %v620 = vadd.f32 %v536, %v619
  %v621 = vpop.f32.mrb[0].mxu0
  %622 = vmatprep.mubr.f32.mxu0 0.0
  %623 = vmatmul.mubr.f32.gmra.mrb[0].mxu0 %v548
  %v624 = vpop.f32.mrb[0].mxu0
  %v625 = vadd.f32 %v541, %v624
  %v626 = vpop.f32.mrb[0].mxu0
  %627 = vdwg.mxu0
  %v628 = vmax.f32 %v620, 0.0
  %v629 = vmax.f32 %v625, 0.0
  %v630 = vld [vmem:[%s5] sm:$0xff]
  %v631 = vld [vmem:[%s6] sm:$0xff]
  %633 = vset.pattern.permute.xlu0 0
  %634 = vperm.xlu0 %633, %v631
  %v635 = vpop.permute.xlu0 %634
  %vm637 = vcmask 130048
  %v639 = vsel %vm637, %v630, 0
  %641 = vmatprep.subr.mxu0 0.0
  %642 = vmatpush1.msra.mxu0 %v628
  %643 = vmatprep.subr.mxu0 0.0
  %644 = vmatpush1.msra.mxu0 %v629
  %645 = vmatprep.subr.mxu0 0.0
  %646 = vmatpush1.msra.mxu0 0.0
  %647 = vmatprep.subr.mxu0 0.0
  %648 = vmatpush1.msra.mxu0 0.0
  %649 = vmatprep.subr.mxu0 0.0
  %650 = vmatpush1.msra.mxu0 0.0
  %651 = vmatprep.subr.mxu0 0.0
  %652 = vmatpush1.msra.mxu0 0.0
  %653 = vmatprep.subr.mxu0 0.0
  %654 = vmatpush1.msra.mxu0 0.0
  %655 = vmatprep.subr.mxu0 0.0
  %656 = vmatpush1.msra.mxu0 0.0
  %657 = vmatprep.subr.mxu0 0.0
  %658 = vmatpush1.msra.mxu0 0.0
  %659 = vmatprep.subr.mxu0 0.0
  %660 = vmatpush1.msra.mxu0 0.0
  %661 = vmatprep.subr.mxu0 0.0
  %662 = vmatpush1.msra.mxu0 0.0
  %663 = vmatprep.subr.mxu0 0.0
  %664 = vmatpush1.msra.mxu0 0.0
  %665 = vmatprep.subr.mxu0 0.0
  %666 = vmatpush1.msra.mxu0 0.0
  %667 = vmatprep.subr.mxu0 0.0
  %668 = vmatpush1.msra.mxu0 0.0
  %669 = vmatprep.subr.mxu0 0.0
  %670 = vmatpush1.msra.mxu0 0.0
  %671 = vmatprep.subr.mxu0 0.0
  %672 = vmatpush1.msra.mxu0 0.0
  %673 = vmatprep.subr.mxu0 0.0
  %674 = vmatpush1.msra.mxu0 0.0
  %675 = vmatprep.subr.mxu0 0.0
  %676 = vmatpush1.msra.mxu0 0.0
  %677 = vmatprep.subr.mxu0 0.0
  %678 = vmatpush1.msra.mxu0 0.0
  %679 = vmatprep.subr.mxu0 0.0
  %680 = vmatpush1.msra.mxu0 0.0
  %681 = vmatprep.subr.mxu0 0.0
  %682 = vmatpush1.msra.mxu0 0.0
  %683 = vmatprep.subr.mxu0 0.0
  %684 = vmatpush1.msra.mxu0 0.0
  %685 = vmatprep.subr.mxu0 0.0
  %686 = vmatpush1.msra.mxu0 0.0
  %687 = vmatprep.subr.mxu0 0.0
  %688 = vmatpush1.msra.mxu0 0.0
  %689 = vmatprep.subr.mxu0 0.0
  %690 = vmatpush1.msra.mxu0 0.0
  %691 = vmatprep.subr.mxu0 0.0
  %692 = vmatpush1.msra.mxu0 0.0
  %693 = vmatprep.subr.mxu0 0.0
  %694 = vmatpush1.msra.mxu0 0.0
  %695 = vmatprep.subr.mxu0 0.0
  %696 = vmatpush1.msra.mxu0 0.0
  %697 = vmatprep.subr.mxu0 0.0
  %698 = vmatpush1.msra.mxu0 0.0
  %699 = vmatprep.subr.mxu0 0.0
  %700 = vmatpush1.msra.mxu0 0.0
  %701 = vmatprep.subr.mxu0 0.0
  %702 = vmatpush1.msra.mxu0 0.0
  %703 = vmatprep.subr.mxu0 0.0
  %704 = vmatpush1.msra.mxu0 0.0
  %705 = vmatprep.mubr.f32.mxu0 0.0
  %706 = vmatmul.mubr.f32.gmra.mrb[0].mxu0 %v639
  %v707 = vpop.f32.mrb[0].mxu0
  %v708 = vadd.f32 %v635, %v707
  %v709 = vpop.f32.mrb[0].mxu0
  %710 = vdwg.mxu0
  %v711 = vmax.f32 %v708, 0.0
  %v712 = vld [vmem:[%s7] sm:$0x7]
  %v713 = vld [vmem:[%s8] sm:$0x7]
  %715 = vset.pattern.permute.xlu0 0
  %716 = vperm.xlu0 %715, %v713
  %v717 = vpop.permute.xlu0 %716
  %vm719 = vcmask 64512
  %v721 = vsel %vm719, %v712, 0
  %723 = vmatprep.subr.mxu0 0.0
  %724 = vmatpush1.msra.mxu0 %v711
  %725 = vmatprep.subr.mxu0 0.0
  %726 = vmatpush1.msra.mxu0 0.0
  %727 = vmatprep.subr.mxu0 0.0
  %728 = vmatpush1.msra.mxu0 0.0
  %729 = vmatprep.subr.mxu0 0.0
  %730 = vmatpush1.msra.mxu0 0.0
  %731 = vmatprep.subr.mxu0 0.0
  %732 = vmatpush1.msra.mxu0 0.0
  %733 = vmatprep.subr.mxu0 0.0
  %734 = vmatpush1.msra.mxu0 0.0
  %735 = vmatprep.subr.mxu0 0.0
  %736 = vmatpush1.msra.mxu0 0.0
  %737 = vmatprep.subr.mxu0 0.0
  %738 = vmatpush1.msra.mxu0 0.0
  %739 = vmatprep.subr.mxu0 0.0
  %740 = vmatpush1.msra.mxu0 0.0
  %741 = vmatprep.subr.mxu0 0.0
  %742 = vmatpush1.msra.mxu0 0.0
  %743 = vmatprep.subr.mxu0 0.0
  %744 = vmatpush1.msra.mxu0 0.0
  %745 = vmatprep.subr.mxu0 0.0
  %746 = vmatpush1.msra.mxu0 0.0
  %747 = vmatprep.subr.mxu0 0.0
  %748 = vmatpush1.msra.mxu0 0.0
  %749 = vmatprep.subr.mxu0 0.0
  %750 = vmatpush1.msra.mxu0 0.0
  %751 = vmatprep.subr.mxu0 0.0
  %752 = vmatpush1.msra.mxu0 0.0
  %753 = vmatprep.subr.mxu0 0.0
  %754 = vmatpush1.msra.mxu0 0.0
  %755 = vmatprep.subr.mxu0 0.0
  %756 = vmatpush1.msra.mxu0 0.0
  %757 = vmatprep.subr.mxu0 0.0
  %758 = vmatpush1.msra.mxu0 0.0
  %759 = vmatprep.subr.mxu0 0.0
  %760 = vmatpush1.msra.mxu0 0.0
  %761 = vmatprep.subr.mxu0 0.0
  %762 = vmatpush1.msra.mxu0 0.0
  %763 = vmatprep.subr.mxu0 0.0
  %764 = vmatpush1.msra.mxu0 0.0
  %765 = vmatprep.subr.mxu0 0.0
  %766 = vmatpush1.msra.mxu0 0.0
  %767 = vmatprep.subr.mxu0 0.0
  %768 = vmatpush1.msra.mxu0 0.0
  %769 = vmatprep.subr.mxu0 0.0
  %770 = vmatpush1.msra.mxu0 0.0
  %771 = vmatprep.subr.mxu0 0.0
  %772 = vmatpush1.msra.mxu0 0.0
  %773 = vmatprep.subr.mxu0 0.0
  %774 = vmatpush1.msra.mxu0 0.0
  %775 = vmatprep.subr.mxu0 0.0
  %776 = vmatpush1.msra.mxu0 0.0
  %777 = vmatprep.subr.mxu0 0.0
  %778 = vmatpush1.msra.mxu0 0.0
  %779 = vmatprep.subr.mxu0 0.0
  %780 = vmatpush1.msra.mxu0 0.0
  %781 = vmatprep.subr.mxu0 0.0
  %782 = vmatpush1.msra.mxu0 0.0
  %783 = vmatprep.subr.mxu0 0.0
  %784 = vmatpush1.msra.mxu0 0.0
  %785 = vmatprep.subr.mxu0 0.0
  %786 = vmatpush1.msra.mxu0 0.0
  %787 = vmatprep.mubr.f32.mxu0 0.0
  %788 = vmatmul.mubr.f32.gmra.mrb[0].mxu0 %v721
  %v789 = vpop.f32.mrb[0].mxu0
  %v790 = vadd.f32 %v717, %v789
  %v791 = vpop.f32.mrb[0].mxu0
  %792 = vdwg.mxu0
  %793 = vst [vmem:[%s9] sm:$0x7] %v790
  // Predicated region
  $region38: #{lstm_iqvia_paper_forward.1} parent=0 // pred_check
    _
  $region39: #{lstm_iqvia_paper_forward.1} parent=0 // pred_check_branch
    %795 = sbr.rel (0) target = $region41
  $region40: #{lstm_iqvia_paper_forward.1} parent=0 // pred_region
    _
  $region41: #{lstm_iqvia_paper_forward.1} parent=0 // pred_fallthru
    _
  // Predicated region
  $region42: #{lstm_iqvia_paper_forward.1} parent=0 // pred_check
    _
  $region43: #{lstm_iqvia_paper_forward.1} parent=0 // pred_check_branch
    %797 = sbr.rel (0) target = $region45
  $region44: #{lstm_iqvia_paper_forward.1} parent=0 // pred_region
    _
  $region45: #{lstm_iqvia_paper_forward.1} parent=0 // pred_fallthru
    _

</llo_original>
